<compile_context>
chip_gen: v5e
topology: v5e:2x2
jax: 0.10.0
libtpu: 0.0.40
codegen_flags: <defaults>
</compile_context>

<pallas_src>
import jax
import jax.numpy as jnp
import numpy as np
from jax import lax
from jax.experimental import pallas as pl
from jax.experimental.pallas import tpu as pltpu

B = 8          # batch size
D = 128        # embedding_dim (joint embedding space)
H = 4 * D      # feed-forward hidden dim (512)
EPS = 1e-5     # nn.LayerNorm default eps
_INV_SQRT2 = 0.7071067811865476

# Row indices inside the packed (16, D) "small params" array.
_R_B_ATTN_V, _R_B_ATTN_T = 0, 1   # composed attention biases (bv @ Wo + bo)
_R_G_VLN1, _R_B_VLN1 = 2, 3       # vision LN1 gamma / beta
_R_G_TLN1, _R_B_TLN1 = 4, 5       # text   LN1 gamma / beta
_R_B2_V, _R_B2_T = 6, 7           # FF second-Linear biases
_R_G_VLN2, _R_B_VLN2 = 8, 9       # vision LN2 gamma / beta
_R_G_TLN2, _R_B_TLN2 = 10, 11     # text   LN2 gamma / beta
_R_BJ = 12                        # joint_representation bias
N_SMALL_ROWS = 16                 # padded to a sublane multiple


def _layernorm(x, g, b):
  mu = jnp.mean(x, axis=-1, keepdims=True)
  var = jnp.mean((x - mu) ** 2, axis=-1, keepdims=True)
  return (x - mu) * lax.rsqrt(var + EPS) * g + b


def _gelu(x):
  # nn.GELU() default = exact erf formulation.
  return 0.5 * x * (1.0 + lax.erf(x * _INV_SQRT2))


def _mm(a_f32, w_bf16):
  # bf16 x bf16 single-pass MXU matmul with f32 accumulation; everything
  # elementwise around it stays f32 (v5e has no bf16 VPU/EUP path).
  return jnp.dot(a_f32.astype(jnp.bfloat16), w_bf16,
                 preferred_element_type=jnp.float32)


def mmtransformer_kernel(
    xin_ref,        # (2B, D) f32: rows [0:B] = text, rows [B:2B] = vision
    w_attn_ref,     # (D, 2D) bf16 = [Wv_t2v@Wo_t2v | Wv_v2t@Wo_v2t]  (pre-composed)
    w_ff1_ref,      # (D, 2H) bf16 = [w1_v | w1_t]
    w_ff2_ref,      # (H, 2D) bf16 = [w2_v | w2_t]
    wj_ref,         # (2D, D) bf16   joint_representation weight
    b1_ref,         # (2, H)  f32: row 0 = b1_v, row 1 = b1_t
    smalls_ref,     # (16, D) f32 packed small params (see _R_* constants)
    out_ref,        # (4B, D) f32 packed outputs: v_out | t_out | joint | sim(pad)
):
  xin = xin_ref[...]
  t = xin[0:B, :]
  v = xin[B:2 * B, :]
  s = smalls_ref[...]

  # --- Cross attention (pre-composed, one fused MXU pass) --------------------
  # The module calls nn.MultiheadAttention on unsqueeze(0) inputs, i.e. with
  # sequence length 1.  Softmax over a single key is identically 1, so (eval
  # semantics: attention dropout = identity) the MHA output reduces EXACTLY to
  # out_proj(v_proj(value)); q/k projections cancel.  v_proj and out_proj are
  # composed OFFLINE in f32 (pack_params), so here it is a single matmul:
  #   rows [0:B]  (text value,   cols [0:D] ) -> attn output added to vision
  #   rows [B:2B] (vision value, cols [D:2D]) -> attn output added to text
  # Off-diagonal blocks are free MXU slack.
  y = _mm(xin, w_attn_ref[...])                               # (2B, 2D)
  attn_v = y[0:B, 0:D] + s[_R_B_ATTN_V:_R_B_ATTN_V + 1, :]
  attn_t = y[B:2 * B, D:2 * D] + s[_R_B_ATTN_T:_R_B_ATTN_T + 1, :]

  # --- Residual + LayerNorm 1 (dropout = identity in eval semantics) ---------
  v_att = _layernorm(v + attn_v,
                     s[_R_G_VLN1:_R_G_VLN1 + 1, :], s[_R_B_VLN1:_R_B_VLN1 + 1, :])
  t_att = _layernorm(t + attn_t,
                     s[_R_G_TLN1:_R_G_TLN1 + 1, :], s[_R_B_TLN1:_R_B_TLN1 + 1, :])

  # --- Feed-forward, fused across streams: rows [0:B]=vision, [B:2B]=text ----
  fs = jnp.concatenate([v_att, t_att], axis=0)                # (2B, D)
  h = _mm(fs, w_ff1_ref[...])                                 # (2B, 2H)
  b1 = b1_ref[...]
  h_v = _gelu(h[0:B, 0:H] + b1[0:1, :])                       # (B, H) f32
  h_t = _gelu(h[B:2 * B, H:2 * H] + b1[1:2, :])               # (B, H) f32
  hs = jnp.concatenate([h_v, h_t], axis=0)                    # (2B, H)
  o = _mm(hs, w_ff2_ref[...])                                 # (2B, 2D)
  ff_v = o[0:B, 0:D] + s[_R_B2_V:_R_B2_V + 1, :]
  ff_t = o[B:2 * B, D:2 * D] + s[_R_B2_T:_R_B2_T + 1, :]

  # --- Residual + LayerNorm 2 -------------------------------------------------
  v_out = _layernorm(v_att + ff_v,
                     s[_R_G_VLN2:_R_G_VLN2 + 1, :], s[_R_B_VLN2:_R_B_VLN2 + 1, :])
  t_out = _layernorm(t_att + ff_t,
                     s[_R_G_TLN2:_R_G_TLN2 + 1, :], s[_R_B_TLN2:_R_B_TLN2 + 1, :])

  # --- Joint representation: ONE matmul on the lane-aligned concat (K=2D=256,
  #     fills the 256-deep MXU on v6e/v7x; concat of two 128-wide blocks needs
  #     no cross-lane movement) --------------------------------------------------
  vt = jnp.concatenate([v_out, t_out], axis=1)                # (B, 2D)
  joint = _mm(vt, wj_ref[...]) + s[_R_BJ:_R_BJ + 1, :]        # (B, D)

  # --- similarity = vision_out @ text_out.T -----------------------------------
  # Explicit bf16 cast of the MXU inputs (the MXU would silently truncate f32
  # anyway); accumulation stays f32.
  sim = lax.dot_general(v_out.astype(jnp.bfloat16), t_out.astype(jnp.bfloat16),
                        (((1,), (1,)), ((), ())),
                        preferred_element_type=jnp.float32)   # (B, B)

  # --- Packed lane-dense output slab -------------------------------------------
  out_ref[0:B, :] = v_out
  out_ref[B:2 * B, :] = t_out
  out_ref[2 * B:3 * B, :] = joint
  out_ref[3 * B:4 * B, :] = jnp.zeros((B, D), jnp.float32)
  out_ref[3 * B:4 * B, 0:B] = sim     # tiny masked store into cols [0:B]


PACKED_ORDER = ["w_attn", "w_ff1", "w_ff2", "wj", "b1", "smalls"]


@jax.jit
def multimodal_forward(vision_features, text_features, packed):
  # One packed (2B, D) input slab: rows [0:B]=text, [B:2B]=vision.
  xin = jnp.concatenate([text_features, vision_features], axis=0)
  inputs = [xin] + [packed[k] for k in PACKED_ORDER]
  vmem = pltpu.MemorySpace.VMEM

  out_shape = jax.ShapeDtypeStruct((4 * B, D), jnp.float32)

  flops = (
      2 * (2 * B) * D * (2 * D)      # fused pre-composed attention
      + 2 * (2 * B) * D * (2 * H)    # fused FF1
      + 2 * (2 * B) * H * (2 * D)    # fused FF2
      + 2 * B * (2 * D) * D          # joint (single K=2D matmul)
      + 2 * B * D * B                # similarity
  )
  bytes_accessed = (
      sum(int(np.prod(x.shape)) * x.dtype.itemsize for x in inputs)
      + int(np.prod(out_shape.shape)) * 4
  )
  cost = pl.CostEstimate(flops=flops,
                         transcendentals=2 * B * H + 4 * B,
                         bytes_accessed=bytes_accessed)

  out = pl.pallas_call(
      mmtransformer_kernel,
      out_shape=out_shape,
      in_specs=[pl.BlockSpec(memory_space=vmem)] * len(inputs),
      out_specs=pl.BlockSpec(memory_space=vmem),
      cost_estimate=cost,
  )(*inputs)

  vision_out = out[0:B, :]
  text_out = out[B:2 * B, :]
  joint = out[2 * B:3 * B, :]
  sim = out[3 * B:4 * B, 0:B]
  return vision_out, text_out, joint, sim


def init_params(key):
  """Deterministic synthetic parameters (shapes per module __init__, weights
  pre-transposed to (in_features, out_features))."""
  p = {}
  ks = iter(jax.random.split(key, 64))

  def lin(din, dout):
    w = jax.random.normal(next(ks), (din, dout), jnp.float32) * 0.02
    b = jax.random.normal(next(ks), (1, dout), jnp.float32) * 0.02
    return w, b

  # Cross-attention: only the value projection (slice of in_proj) and out_proj
  # matter for seq-len-1 attention (see kernel comment).
  p["wv_t2v"], p["bv_t2v"] = lin(D, D)
  p["wo_t2v"], p["bo_t2v"] = lin(D, D)
  p["wv_v2t"], p["bv_v2t"] = lin(D, D)
  p["wo_v2t"], p["bo_v2t"] = lin(D, D)
  # Feed-forward blocks: D -> 4D -> D.
  p["w1_v"], p["b1_v"] = lin(D, H)
  p["w2_v"], p["b2_v"] = lin(H, D)
  p["w1_t"], p["b1_t"] = lin(D, H)
  p["w2_t"], p["b2_t"] = lin(H, D)
  # LayerNorms (PyTorch default init: weight=1, bias=0).
  for name in ("vln1", "tln1", "vln2", "tln2"):
    p[f"g_{name}"] = jnp.ones((1, D), jnp.float32)
    p[f"b_{name}"] = jnp.zeros((1, D), jnp.float32)
  # joint_representation: Linear(2D -> D).
  p["wj"], p["bj"] = lin(2 * D, D)
  return p


def pack_params(p):
  """One-time (outside jit) packing for the kernel:
     - pre-compose the seq-len-1 attention chain in f32 (Wv@Wo, bv@Wo+bo),
       then cast the composed weight to bf16 ONCE (single rounding),
     - fuse paired per-stream weights along the output axis (one MXU pass per pair),
     - cast all big weights to bf16 (halves the dominant HBM weight traffic),
     - stack the small (1, D) vectors into a single (16, D) f32 array (one DMA).
     Optional further DMA cuts (int8 on v5e/v6e, fp8 on v7x for w_ff1/w_ff2)
     are intentionally not applied (accuracy caveat)."""
  bf16 = jnp.bfloat16
  # f32 composition, then one bf16 cast (avoids double rounding).
  w_attn_t2v = p["wv_t2v"] @ p["wo_t2v"]                       # (D, D) f32
  w_attn_v2t = p["wv_v2t"] @ p["wo_v2t"]                       # (D, D) f32
  b_attn_v = p["bv_t2v"] @ p["wo_t2v"] + p["bo_t2v"]           # (1, D) f32
  b_attn_t = p["bv_v2t"] @ p["wo_v2t"] + p["bo_v2t"]           # (1, D) f32

  packed = {
      "w_attn": jnp.concatenate([w_attn_t2v, w_attn_v2t], axis=1).astype(bf16),
      "w_ff1": jnp.concatenate([p["w1_v"], p["w1_t"]], axis=1).astype(bf16),
      "w_ff2": jnp.concatenate([p["w2_v"], p["w2_t"]], axis=1).astype(bf16),
      "wj": p["wj"].astype(bf16),
      "b1": jnp.concatenate([p["b1_v"], p["b1_t"]], axis=0).astype(jnp.float32),
  }
  rows = [
      b_attn_v, b_attn_t,
      p["g_vln1"], p["b_vln1"], p["g_tln1"], p["b_tln1"],
      p["b2_v"], p["b2_t"],
      p["g_vln2"], p["b_vln2"], p["g_tln2"], p["b_tln2"],
      p["bj"],
      jnp.zeros((1, D), jnp.float32), jnp.zeros((1, D), jnp.float32),
      jnp.zeros((1, D), jnp.float32),
  ]
  packed["smalls"] = jnp.concatenate(rows, axis=0).astype(jnp.float32)
  assert packed["smalls"].shape == (N_SMALL_ROWS, D)
  return packed


def reference_forward(v, t, packed):
  """Pure-JAX f32 reference of the same math, consuming the SAME packed bf16
  weights (upcast to f32) so the only numerical difference vs the kernel is
  the bf16 rounding of the MXU activation inputs."""
  wa = packed["w_attn"].astype(jnp.float32)
  w1 = packed["w_ff1"].astype(jnp.float32)
  w2 = packed["w_ff2"].astype(jnp.float32)
  wj = packed["wj"].astype(jnp.float32)
  b1 = packed["b1"]
  s = packed["smalls"]

  def ln(x, g, b):
    mu = x.mean(-1, keepdims=True)
    var = ((x - mu) ** 2).mean(-1, keepdims=True)
    return (x - mu) / jnp.sqrt(var + EPS) * g + b

  def gelu(x):
    return 0.5 * x * (1.0 + lax.erf(x * _INV_SQRT2))

  attn_v = t @ wa[:, :D] + s[_R_B_ATTN_V]
  attn_t = v @ wa[:, D:] + s[_R_B_ATTN_T]
  v_att = ln(v + attn_v, s[_R_G_VLN1], s[_R_B_VLN1])
  t_att = ln(t + attn_t, s[_R_G_TLN1], s[_R_B_TLN1])
  v_ff = gelu(v_att @ w1[:, :H] + b1[0]) @ w2[:, :D] + s[_R_B2_V]
  t_ff = gelu(t_att @ w1[:, H:] + b1[1]) @ w2[:, D:] + s[_R_B2_T]
  v_out = ln(v_att + v_ff, s[_R_G_VLN2], s[_R_B_VLN2])
  t_out = ln(t_att + t_ff, s[_R_G_TLN2], s[_R_B_TLN2])
  joint = jnp.concatenate([v_out, t_out], axis=1) @ wj + s[_R_BJ]
  sim = v_out @ t_out.T
  return v_out, t_out, joint, sim


if __name__ == "__main__":
  key = jax.random.PRNGKey(0)
  k_v, k_t, k_p = jax.random.split(key, 3)
  vision_features = jax.random.normal(k_v, (B, D), jnp.float32)
  text_features = jax.random.normal(k_t, (B, D), jnp.float32)
  params = init_params(k_p)
  packed = pack_params(params)

  outs = multimodal_forward(vision_features, text_features, packed)
  outs = jax.block_until_ready(outs)
  v_out, t_out, joint, sim = outs

  # Light correctness sanity check against a pure-JAX reference.
  refs = reference_forward(vision_features, text_features, packed)
  # v_out / t_out / joint are O(1)-magnitude; bf16 matmul inputs stay well
  # within 2e-2 of the f32 reference.
  for got, ref in zip((v_out, t_out, joint), refs[:3]):
    np.testing.assert_allclose(np.asarray(got), np.asarray(ref), rtol=2e-2, atol=2e-2)
  # similarity entries are sums of 128 unit-variance products (O(10) magnitude);
  # bf16 rounding at the MXU inputs shows up as a few e-2 absolute there.
  np.testing.assert_allclose(np.asarray(sim), np.asarray(refs[3]),
                             rtol=2e-2, atol=1.5e-1)

  assert v_out.shape == (B, D) and t_out.shape == (B, D)
  assert joint.shape == (B, D) and sim.shape == (B, B)
  print("KERNEL_OK")
</pallas_src>

<mosaic_0001>
module attributes {stable_mosaic.version = 11 : i64} {
  func.func @mmtransformer_kernel(%arg0: memref<16x128xf32, #tpu.memory_space<vmem>>, %arg1: memref<128x256xbf16, #tpu.memory_space<vmem>>, %arg2: memref<128x1024xbf16, #tpu.memory_space<vmem>>, %arg3: memref<512x256xbf16, #tpu.memory_space<vmem>>, %arg4: memref<256x128xbf16, #tpu.memory_space<vmem>>, %arg5: memref<2x512xf32, #tpu.memory_space<vmem>>, %arg6: memref<16x128xf32, #tpu.memory_space<vmem>>, %arg7: memref<32x128xf32, #tpu.memory_space<vmem>>) attributes {dimension_semantics = [], scalar_prefetch = 0 : i64, scratch_operands = 0 : i64, tpu.core_type = #tpu.core_type<tc>} {
    %c0 = arith.constant 0 : index
    %c0_0 = arith.constant 0 : index
    %0 = vector.load %arg0[%c0, %c0_0] : memref<16x128xf32, #tpu.memory_space<vmem>>, vector<16x128xf32>
    %1 = vector.extract_strided_slice %0 {offsets = [0, 0], sizes = [8, 128], strides = [1, 1]} : vector<16x128xf32> to vector<8x128xf32>
    %2 = vector.extract_strided_slice %0 {offsets = [8, 0], sizes = [8, 128], strides = [1, 1]} : vector<16x128xf32> to vector<8x128xf32>
    %c0_1 = arith.constant 0 : index
    %c0_2 = arith.constant 0 : index
    %3 = vector.load %arg6[%c0_1, %c0_2] : memref<16x128xf32, #tpu.memory_space<vmem>>, vector<16x128xf32>
    %c0_3 = arith.constant 0 : index
    %c0_4 = arith.constant 0 : index
    %4 = vector.load %arg1[%c0_3, %c0_4] : memref<128x256xbf16, #tpu.memory_space<vmem>>, vector<128x256xbf16>
    %5 = arith.truncf %0 : vector<16x128xf32> to vector<16x128xbf16>
    %cst = arith.constant dense<0.000000e+00> : vector<16x256xf32>
    %6 = tpu.matmul %5, %4, %cst {dimension_numbers = #tpu.dot_dimension_numbers<[1], [0], [0], [1], [0, 0, 1, 1], [], []>} : vector<16x128xbf16>, vector<128x256xbf16>, vector<16x256xf32> -> vector<16x256xf32>
    %7 = vector.extract_strided_slice %6 {offsets = [0, 0], sizes = [8, 128], strides = [1, 1]} : vector<16x256xf32> to vector<8x128xf32>
    %8 = vector.extract_strided_slice %3 {offsets = [0, 0], sizes = [1, 128], strides = [1, 1]} : vector<16x128xf32> to vector<1x128xf32>
    %9 = vector.broadcast %8 : vector<1x128xf32> to vector<8x128xf32>
    %10 = arith.addf %7, %9 : vector<8x128xf32>
    %11 = vector.extract_strided_slice %6 {offsets = [8, 128], sizes = [8, 128], strides = [1, 1]} : vector<16x256xf32> to vector<8x128xf32>
    %12 = vector.extract_strided_slice %3 {offsets = [1, 0], sizes = [1, 128], strides = [1, 1]} : vector<16x128xf32> to vector<1x128xf32>
    %13 = vector.broadcast %12 : vector<1x128xf32> to vector<8x128xf32>
    %14 = arith.addf %11, %13 : vector<8x128xf32>
    %15 = arith.addf %2, %10 : vector<8x128xf32>
    %16 = vector.extract_strided_slice %3 {offsets = [2, 0], sizes = [1, 128], strides = [1, 1]} : vector<16x128xf32> to vector<1x128xf32>
    %17 = vector.extract_strided_slice %3 {offsets = [3, 0], sizes = [1, 128], strides = [1, 1]} : vector<16x128xf32> to vector<1x128xf32>
    %cst_5 = arith.constant dense<0.000000e+00> : vector<8xf32>
    %18 = vector.multi_reduction <add>, %15, %cst_5 [1] : vector<8x128xf32> to vector<8xf32>
    %19 = vector.shape_cast %18 : vector<8xf32> to vector<8x1xf32>
    %cst_6 = arith.constant 1.280000e+02 : f32
    %20 = vector.broadcast %cst_6 : f32 to vector<8x1xf32>
    %21 = arith.divf %19, %20 : vector<8x1xf32>
    %22 = vector.broadcast %21 : vector<8x1xf32> to vector<8x128xf32>
    %23 = arith.subf %15, %22 : vector<8x128xf32>
    %24 = arith.mulf %23, %23 : vector<8x128xf32>
    %cst_7 = arith.constant dense<0.000000e+00> : vector<8xf32>
    %25 = vector.multi_reduction <add>, %24, %cst_7 [1] : vector<8x128xf32> to vector<8xf32>
    %26 = vector.shape_cast %25 : vector<8xf32> to vector<8x1xf32>
    %cst_8 = arith.constant 1.280000e+02 : f32
    %27 = vector.broadcast %cst_8 : f32 to vector<8x1xf32>
    %28 = arith.divf %26, %27 : vector<8x1xf32>
    %29 = vector.broadcast %21 : vector<8x1xf32> to vector<8x128xf32>
    %30 = arith.subf %15, %29 : vector<8x128xf32>
    %cst_9 = arith.constant 9.99999974E-6 : f32
    %31 = vector.broadcast %cst_9 : f32 to vector<8x1xf32>
    %32 = arith.addf %28, %31 : vector<8x1xf32>
    %33 = math.rsqrt %32 : vector<8x1xf32>
    %34 = vector.broadcast %33 : vector<8x1xf32> to vector<8x128xf32>
    %35 = arith.mulf %30, %34 : vector<8x128xf32>
    %36 = vector.broadcast %16 : vector<1x128xf32> to vector<8x128xf32>
    %37 = arith.mulf %35, %36 : vector<8x128xf32>
    %38 = vector.broadcast %17 : vector<1x128xf32> to vector<8x128xf32>
    %39 = arith.addf %37, %38 : vector<8x128xf32>
    %40 = arith.addf %1, %14 : vector<8x128xf32>
    %41 = vector.extract_strided_slice %3 {offsets = [4, 0], sizes = [1, 128], strides = [1, 1]} : vector<16x128xf32> to vector<1x128xf32>
    %42 = vector.extract_strided_slice %3 {offsets = [5, 0], sizes = [1, 128], strides = [1, 1]} : vector<16x128xf32> to vector<1x128xf32>
    %cst_10 = arith.constant dense<0.000000e+00> : vector<8xf32>
    %43 = vector.multi_reduction <add>, %40, %cst_10 [1] : vector<8x128xf32> to vector<8xf32>
    %44 = vector.shape_cast %43 : vector<8xf32> to vector<8x1xf32>
    %cst_11 = arith.constant 1.280000e+02 : f32
    %45 = vector.broadcast %cst_11 : f32 to vector<8x1xf32>
    %46 = arith.divf %44, %45 : vector<8x1xf32>
    %47 = vector.broadcast %46 : vector<8x1xf32> to vector<8x128xf32>
    %48 = arith.subf %40, %47 : vector<8x128xf32>
    %49 = arith.mulf %48, %48 : vector<8x128xf32>
    %cst_12 = arith.constant dense<0.000000e+00> : vector<8xf32>
    %50 = vector.multi_reduction <add>, %49, %cst_12 [1] : vector<8x128xf32> to vector<8xf32>
    %51 = vector.shape_cast %50 : vector<8xf32> to vector<8x1xf32>
    %cst_13 = arith.constant 1.280000e+02 : f32
    %52 = vector.broadcast %cst_13 : f32 to vector<8x1xf32>
    %53 = arith.divf %51, %52 : vector<8x1xf32>
    %54 = vector.broadcast %46 : vector<8x1xf32> to vector<8x128xf32>
    %55 = arith.subf %40, %54 : vector<8x128xf32>
    %cst_14 = arith.constant 9.99999974E-6 : f32
    %56 = vector.broadcast %cst_14 : f32 to vector<8x1xf32>
    %57 = arith.addf %53, %56 : vector<8x1xf32>
    %58 = math.rsqrt %57 : vector<8x1xf32>
    %59 = vector.broadcast %58 : vector<8x1xf32> to vector<8x128xf32>
    %60 = arith.mulf %55, %59 : vector<8x128xf32>
    %61 = vector.broadcast %41 : vector<1x128xf32> to vector<8x128xf32>
    %62 = arith.mulf %60, %61 : vector<8x128xf32>
    %63 = vector.broadcast %42 : vector<1x128xf32> to vector<8x128xf32>
    %64 = arith.addf %62, %63 : vector<8x128xf32>
    %65 = tpu.concatenate %39, %64 in 0 : vector<8x128xf32>, vector<8x128xf32> -> vector<16x128xf32>
    %c0_15 = arith.constant 0 : index
    %c0_16 = arith.constant 0 : index
    %66 = vector.load %arg2[%c0_15, %c0_16] : memref<128x1024xbf16, #tpu.memory_space<vmem>>, vector<128x1024xbf16>
    %67 = arith.truncf %65 : vector<16x128xf32> to vector<16x128xbf16>
    %cst_17 = arith.constant dense<0.000000e+00> : vector<16x1024xf32>
    %68 = tpu.matmul %67, %66, %cst_17 {dimension_numbers = #tpu.dot_dimension_numbers<[1], [0], [0], [1], [0, 0, 1, 1], [], []>} : vector<16x128xbf16>, vector<128x1024xbf16>, vector<16x1024xf32> -> vector<16x1024xf32>
    %c0_18 = arith.constant 0 : index
    %c0_19 = arith.constant 0 : index
    %69 = vector.load %arg5[%c0_18, %c0_19] : memref<2x512xf32, #tpu.memory_space<vmem>>, vector<2x512xf32>
    %70 = vector.extract_strided_slice %68 {offsets = [0, 0], sizes = [8, 512], strides = [1, 1]} : vector<16x1024xf32> to vector<8x512xf32>
    %71 = vector.extract_strided_slice %69 {offsets = [0, 0], sizes = [1, 512], strides = [1, 1]} : vector<2x512xf32> to vector<1x512xf32>
    %72 = vector.broadcast %71 : vector<1x512xf32> to vector<8x512xf32>
    %73 = arith.addf %70, %72 : vector<8x512xf32>
    %cst_20 = arith.constant 5.000000e-01 : f32
    %74 = vector.broadcast %cst_20 : f32 to vector<8x512xf32>
    %75 = arith.mulf %74, %73 : vector<8x512xf32>
    %cst_21 = arith.constant 0.707106769 : f32
    %76 = vector.broadcast %cst_21 : f32 to vector<8x512xf32>
    %77 = arith.mulf %73, %76 : vector<8x512xf32>
    %78 = math.erf %77 : vector<8x512xf32>
    %cst_22 = arith.constant 1.000000e+00 : f32
    %79 = vector.broadcast %cst_22 : f32 to vector<8x512xf32>
    %80 = arith.addf %79, %78 : vector<8x512xf32>
    %81 = arith.mulf %75, %80 : vector<8x512xf32>
    %82 = vector.extract_strided_slice %68 {offsets = [8, 512], sizes = [8, 512], strides = [1, 1]} : vector<16x1024xf32> to vector<8x512xf32>
    %83 = vector.extract_strided_slice %69 {offsets = [1, 0], sizes = [1, 512], strides = [1, 1]} : vector<2x512xf32> to vector<1x512xf32>
    %84 = vector.broadcast %83 : vector<1x512xf32> to vector<8x512xf32>
    %85 = arith.addf %82, %84 : vector<8x512xf32>
    %cst_23 = arith.constant 5.000000e-01 : f32
    %86 = vector.broadcast %cst_23 : f32 to vector<8x512xf32>
    %87 = arith.mulf %86, %85 : vector<8x512xf32>
    %cst_24 = arith.constant 0.707106769 : f32
    %88 = vector.broadcast %cst_24 : f32 to vector<8x512xf32>
    %89 = arith.mulf %85, %88 : vector<8x512xf32>
    %90 = math.erf %89 : vector<8x512xf32>
    %cst_25 = arith.constant 1.000000e+00 : f32
    %91 = vector.broadcast %cst_25 : f32 to vector<8x512xf32>
    %92 = arith.addf %91, %90 : vector<8x512xf32>
    %93 = arith.mulf %87, %92 : vector<8x512xf32>
    %94 = tpu.concatenate %81, %93 in 0 : vector<8x512xf32>, vector<8x512xf32> -> vector<16x512xf32>
    %c0_26 = arith.constant 0 : index
    %c0_27 = arith.constant 0 : index
    %95 = vector.load %arg3[%c0_26, %c0_27] : memref<512x256xbf16, #tpu.memory_space<vmem>>, vector<512x256xbf16>
    %96 = arith.truncf %94 : vector<16x512xf32> to vector<16x512xbf16>
    %cst_28 = arith.constant dense<0.000000e+00> : vector<16x256xf32>
    %97 = tpu.matmul %96, %95, %cst_28 {dimension_numbers = #tpu.dot_dimension_numbers<[1], [0], [0], [1], [0, 0, 1, 1], [], []>} : vector<16x512xbf16>, vector<512x256xbf16>, vector<16x256xf32> -> vector<16x256xf32>
    %98 = vector.extract_strided_slice %97 {offsets = [0, 0], sizes = [8, 128], strides = [1, 1]} : vector<16x256xf32> to vector<8x128xf32>
    %99 = vector.extract_strided_slice %3 {offsets = [6, 0], sizes = [1, 128], strides = [1, 1]} : vector<16x128xf32> to vector<1x128xf32>
    %100 = vector.broadcast %99 : vector<1x128xf32> to vector<8x128xf32>
    %101 = arith.addf %98, %100 : vector<8x128xf32>
    %102 = vector.extract_strided_slice %97 {offsets = [8, 128], sizes = [8, 128], strides = [1, 1]} : vector<16x256xf32> to vector<8x128xf32>
    %103 = vector.extract_strided_slice %3 {offsets = [7, 0], sizes = [1, 128], strides = [1, 1]} : vector<16x128xf32> to vector<1x128xf32>
    %104 = vector.broadcast %103 : vector<1x128xf32> to vector<8x128xf32>
    %105 = arith.addf %102, %104 : vector<8x128xf32>
    %106 = arith.addf %39, %101 : vector<8x128xf32>
    %107 = vector.extract_strided_slice %3 {offsets = [8, 0], sizes = [1, 128], strides = [1, 1]} : vector<16x128xf32> to vector<1x128xf32>
    %108 = vector.extract_strided_slice %3 {offsets = [9, 0], sizes = [1, 128], strides = [1, 1]} : vector<16x128xf32> to vector<1x128xf32>
    %cst_29 = arith.constant dense<0.000000e+00> : vector<8xf32>
    %109 = vector.multi_reduction <add>, %106, %cst_29 [1] : vector<8x128xf32> to vector<8xf32>
    %110 = vector.shape_cast %109 : vector<8xf32> to vector<8x1xf32>
    %cst_30 = arith.constant 1.280000e+02 : f32
    %111 = vector.broadcast %cst_30 : f32 to vector<8x1xf32>
    %112 = arith.divf %110, %111 : vector<8x1xf32>
    %113 = vector.broadcast %112 : vector<8x1xf32> to vector<8x128xf32>
    %114 = arith.subf %106, %113 : vector<8x128xf32>
    %115 = arith.mulf %114, %114 : vector<8x128xf32>
    %cst_31 = arith.constant dense<0.000000e+00> : vector<8xf32>
    %116 = vector.multi_reduction <add>, %115, %cst_31 [1] : vector<8x128xf32> to vector<8xf32>
    %117 = vector.shape_cast %116 : vector<8xf32> to vector<8x1xf32>
    %cst_32 = arith.constant 1.280000e+02 : f32
    %118 = vector.broadcast %cst_32 : f32 to vector<8x1xf32>
    %119 = arith.divf %117, %118 : vector<8x1xf32>
    %120 = vector.broadcast %112 : vector<8x1xf32> to vector<8x128xf32>
    %121 = arith.subf %106, %120 : vector<8x128xf32>
    %cst_33 = arith.constant 9.99999974E-6 : f32
    %122 = vector.broadcast %cst_33 : f32 to vector<8x1xf32>
    %123 = arith.addf %119, %122 : vector<8x1xf32>
    %124 = math.rsqrt %123 : vector<8x1xf32>
    %125 = vector.broadcast %124 : vector<8x1xf32> to vector<8x128xf32>
    %126 = arith.mulf %121, %125 : vector<8x128xf32>
    %127 = vector.broadcast %107 : vector<1x128xf32> to vector<8x128xf32>
    %128 = arith.mulf %126, %127 : vector<8x128xf32>
    %129 = vector.broadcast %108 : vector<1x128xf32> to vector<8x128xf32>
    %130 = arith.addf %128, %129 : vector<8x128xf32>
    %131 = arith.addf %64, %105 : vector<8x128xf32>
    %132 = vector.extract_strided_slice %3 {offsets = [10, 0], sizes = [1, 128], strides = [1, 1]} : vector<16x128xf32> to vector<1x128xf32>
    %133 = vector.extract_strided_slice %3 {offsets = [11, 0], sizes = [1, 128], strides = [1, 1]} : vector<16x128xf32> to vector<1x128xf32>
    %cst_34 = arith.constant dense<0.000000e+00> : vector<8xf32>
    %134 = vector.multi_reduction <add>, %131, %cst_34 [1] : vector<8x128xf32> to vector<8xf32>
    %135 = vector.shape_cast %134 : vector<8xf32> to vector<8x1xf32>
    %cst_35 = arith.constant 1.280000e+02 : f32
    %136 = vector.broadcast %cst_35 : f32 to vector<8x1xf32>
    %137 = arith.divf %135, %136 : vector<8x1xf32>
    %138 = vector.broadcast %137 : vector<8x1xf32> to vector<8x128xf32>
    %139 = arith.subf %131, %138 : vector<8x128xf32>
    %140 = arith.mulf %139, %139 : vector<8x128xf32>
    %cst_36 = arith.constant dense<0.000000e+00> : vector<8xf32>
    %141 = vector.multi_reduction <add>, %140, %cst_36 [1] : vector<8x128xf32> to vector<8xf32>
    %142 = vector.shape_cast %141 : vector<8xf32> to vector<8x1xf32>
    %cst_37 = arith.constant 1.280000e+02 : f32
    %143 = vector.broadcast %cst_37 : f32 to vector<8x1xf32>
    %144 = arith.divf %142, %143 : vector<8x1xf32>
    %145 = vector.broadcast %137 : vector<8x1xf32> to vector<8x128xf32>
    %146 = arith.subf %131, %145 : vector<8x128xf32>
    %cst_38 = arith.constant 9.99999974E-6 : f32
    %147 = vector.broadcast %cst_38 : f32 to vector<8x1xf32>
    %148 = arith.addf %144, %147 : vector<8x1xf32>
    %149 = math.rsqrt %148 : vector<8x1xf32>
    %150 = vector.broadcast %149 : vector<8x1xf32> to vector<8x128xf32>
    %151 = arith.mulf %146, %150 : vector<8x128xf32>
    %152 = vector.broadcast %132 : vector<1x128xf32> to vector<8x128xf32>
    %153 = arith.mulf %151, %152 : vector<8x128xf32>
    %154 = vector.broadcast %133 : vector<1x128xf32> to vector<8x128xf32>
    %155 = arith.addf %153, %154 : vector<8x128xf32>
    %156 = tpu.concatenate %130, %155 in 1 : vector<8x128xf32>, vector<8x128xf32> -> vector<8x256xf32>
    %c0_39 = arith.constant 0 : index
    %c0_40 = arith.constant 0 : index
    %157 = vector.load %arg4[%c0_39, %c0_40] : memref<256x128xbf16, #tpu.memory_space<vmem>>, vector<256x128xbf16>
    %158 = arith.truncf %156 : vector<8x256xf32> to vector<8x256xbf16>
    %cst_41 = arith.constant dense<0.000000e+00> : vector<8x128xf32>
    %159 = tpu.matmul %158, %157, %cst_41 {dimension_numbers = #tpu.dot_dimension_numbers<[1], [0], [0], [1], [0, 0, 1, 1], [], []>} : vector<8x256xbf16>, vector<256x128xbf16>, vector<8x128xf32> -> vector<8x128xf32>
    %160 = vector.extract_strided_slice %3 {offsets = [12, 0], sizes = [1, 128], strides = [1, 1]} : vector<16x128xf32> to vector<1x128xf32>
    %161 = vector.broadcast %160 : vector<1x128xf32> to vector<8x128xf32>
    %162 = arith.addf %159, %161 : vector<8x128xf32>
    %163 = arith.truncf %130 : vector<8x128xf32> to vector<8x128xbf16>
    %164 = arith.truncf %155 : vector<8x128xf32> to vector<8x128xbf16>
    %cst_42 = arith.constant dense<0.000000e+00> : vector<8x8xf32>
    %165 = tpu.matmul %163, %164, %cst_42 {dimension_numbers = #tpu.dot_dimension_numbers<[1], [1], [0], [0], [0, 0, 1, 0], [], []>} : vector<8x128xbf16>, vector<8x128xbf16>, vector<8x8xf32> -> vector<8x8xf32>
    %c0_43 = arith.constant 0 : index
    %c0_44 = arith.constant 0 : index
    %166 = vector.load %arg7[%c0_43, %c0_44] : memref<32x128xf32, #tpu.memory_space<vmem>>, vector<8x128xf32>
    tpu.vector_store %arg7[%c0_43, %c0_44], %130 {strides = array<i32>} : memref<32x128xf32, #tpu.memory_space<vmem>>, vector<8x128xf32>,
    %c8 = arith.constant 8 : index
    %c0_45 = arith.constant 0 : index
    %167 = vector.load %arg7[%c8, %c0_45] : memref<32x128xf32, #tpu.memory_space<vmem>>, vector<8x128xf32>
    tpu.vector_store %arg7[%c8, %c0_45], %155 {strides = array<i32>} : memref<32x128xf32, #tpu.memory_space<vmem>>, vector<8x128xf32>,
    %c16 = arith.constant 16 : index
    %c0_46 = arith.constant 0 : index
    %168 = vector.load %arg7[%c16, %c0_46] : memref<32x128xf32, #tpu.memory_space<vmem>>, vector<8x128xf32>
    tpu.vector_store %arg7[%c16, %c0_46], %162 {strides = array<i32>} : memref<32x128xf32, #tpu.memory_space<vmem>>, vector<8x128xf32>,
    %cst_47 = arith.constant 0.000000e+00 : f32
    %169 = vector.broadcast %cst_47 : f32 to vector<8x128xf32>
    %c24 = arith.constant 24 : index
    %c0_48 = arith.constant 0 : index
    %170 = vector.load %arg7[%c24, %c0_48] : memref<32x128xf32, #tpu.memory_space<vmem>>, vector<8x128xf32>
    tpu.vector_store %arg7[%c24, %c0_48], %169 {strides = array<i32>} : memref<32x128xf32, #tpu.memory_space<vmem>>, vector<8x128xf32>,
    %c24_49 = arith.constant 24 : index
    %c0_50 = arith.constant 0 : index
    %171 = vector.load %arg7[%c24_49, %c0_50] : memref<32x128xf32, #tpu.memory_space<vmem>>, vector<8x8xf32>
    tpu.vector_store %arg7[%c24_49, %c0_50], %165 {strides = array<i32>} : memref<32x128xf32, #tpu.memory_space<vmem>>, vector<8x8xf32>,
    return
  }
}

</mosaic_0001>

<llo_original>
// kernel: multimodal_forward.1
$region0: #{multimodal_forward.1}
  #allocation0 [shape = 'u32[]', space=smem, size = 0x4, offset = 0x4, fixed_abs, tag = 'smem constant byte address 0x4 - core index']
  #allocation1 [shape = 'u32[72,128]{1,0:T(1,128)}', space=vmem, size = 0x9000, scoped, tag = 'internal scratch']
  %s0 = inlined_call_operand.vmem [shape: f32[16,128], index: 0, kind: input, shape index: {}]
  %s1 = inlined_call_operand.hbm [shape: bf16[128,256], index: 1, kind: input, shape index: {}]
  %s2 = inlined_call_operand.hbm [shape: bf16[128,1024], index: 2, kind: input, shape index: {}]
  %s3 = inlined_call_operand.hbm [shape: bf16[512,256], index: 3, kind: input, shape index: {}]
  %s4 = inlined_call_operand.hbm [shape: bf16[256,128], index: 4, kind: input, shape index: {}]
  %s5 = inlined_call_operand.vmem [shape: f32[2,512], index: 5, kind: input, shape index: {}]
  %s6 = inlined_call_operand.vmem [shape: f32[16,128], index: 6, kind: input, shape index: {}]
  %s7 = inlined_call_operand.vmem [shape: f32[32,128], index: 7, kind: output, shape index: {}]
  %s8 = sld [smem:[#allocation0]]
  $region54: #{multimodal_forward.1} parent=0
    _
  %s10 = ssub.s32 1, %s8
  %s11 = scalar_select 0, %s10, %s8
  $region1: #{multimodal_forward.1} parent=0
    #allocation2 [shape = 'u8[65536]{0}', space=vmem, size = 0x10000, scoped, tag = 'input window, operand 1, single buffered']
    #allocation3 [shape = 's32[1]{0}', space=sflag, size = 0x4, scoped, tag = 'scoped memory for multimodal_forward.1']
    #allocation4 [shape = 'u8[262144]{0}', space=vmem, size = 0x40000, scoped, tag = 'input window, operand 2, single buffered']
    #allocation5 [shape = 's32[1]{0}', space=sflag, size = 0x4, scoped, tag = 'scoped memory for multimodal_forward.1']
    #allocation6 [shape = 'u8[262144]{0}', space=vmem, size = 0x40000, scoped, tag = 'input window, operand 3, single buffered']
    #allocation7 [shape = 'u8[65536]{0}', space=vmem, size = 0x10000, scoped, tag = 'input window, operand 4, single buffered']
    #allocation8 [shape = 's32[1]{0}', space=sflag, size = 0x4, scoped, tag = 'scoped memory for multimodal_forward.1']
    %12 = vsyncpa [#allocation3], 0
    %13 = vsyncpa [#allocation5], 0
    %14 = vsyncpa [#allocation8], 0
    // Predicated region
    $region2: #{multimodal_forward.1} parent=1 // pred_check
      _
    $region3: #{multimodal_forward.1} parent=1 // pred_check_branch
      %16 = sbr.rel (0) target = $region5
    $region4: #{multimodal_forward.1} parent=1 // pred_region
      _
    $region5: #{multimodal_forward.1} parent=1 // pred_fallthru
      _
    // Predicated region
    $region6: #{multimodal_forward.1} parent=1 // pred_check
      _
    $region7: #{multimodal_forward.1} parent=1 // pred_check_branch
      %18 = sbr.rel (0) target = $region9
    $region8: #{multimodal_forward.1} parent=1 // pred_region
      %20 = vsyncadd [#allocation3], 0
      %s21 = sshll.u32 %s1, 4
      %s22 = int_to_ptr.hbm [resolvable:$true] %s21
      %s23 = sshll.u32 [#allocation2], 4
      %s24 = int_to_ptr.vmem [resolvable:$true] %s23
      %29 = dma.hbm_to_vmem [thread:$0]  %s22, 2048, %s24, [#allocation3], 128, 128, 8
    $region9: #{multimodal_forward.1} parent=1 // pred_fallthru
      _
    // Predicated region
    $region10: #{multimodal_forward.1} parent=1 // pred_check
      _
    $region11: #{multimodal_forward.1} parent=1 // pred_check_branch
      %31 = sbr.rel (0) target = $region13
    $region12: #{multimodal_forward.1} parent=1 // pred_region
      %33 = vsyncadd [#allocation5], 0
      %s34 = sshll.u32 %s2, 4
      %s35 = int_to_ptr.hbm [resolvable:$true] %s34
      %s36 = sshll.u32 [#allocation4], 4
      %s37 = int_to_ptr.vmem [resolvable:$true] %s36
      %42 = dma.hbm_to_vmem [thread:$0]  %s35, 8192, %s37, [#allocation5], 512, 512, 32
    $region13: #{multimodal_forward.1} parent=1 // pred_fallthru
      _
    // Predicated region
    $region14: #{multimodal_forward.1} parent=1 // pred_check
      _
    $region15: #{multimodal_forward.1} parent=1 // pred_check_branch
      %44 = sbr.rel (0) target = $region17
    $region16: #{multimodal_forward.1} parent=1 // pred_region
      %46 = vsyncadd [#allocation5], 0
      %s47 = sshll.u32 %s3, 4
      %s48 = int_to_ptr.hbm [resolvable:$true] %s47
      %s49 = sshll.u32 [#allocation6], 4
      %s50 = int_to_ptr.vmem [resolvable:$true] %s49
      %55 = dma.hbm_to_vmem [thread:$0]  %s48, 8192, %s50, [#allocation5], 128, 128, 8
    $region17: #{multimodal_forward.1} parent=1 // pred_fallthru
      _
    // Predicated region
    $region18: #{multimodal_forward.1} parent=1 // pred_check
      _
    $region19: #{multimodal_forward.1} parent=1 // pred_check_branch
      %57 = sbr.rel (0) target = $region21
    $region20: #{multimodal_forward.1} parent=1 // pred_region
      %59 = vsyncadd [#allocation8], 0
      %s60 = sshll.u32 %s4, 4
      %s61 = int_to_ptr.hbm [resolvable:$true] %s60
      %s62 = sshll.u32 [#allocation7], 4
      %s63 = int_to_ptr.vmem [resolvable:$true] %s62
      %68 = dma.hbm_to_vmem [thread:$0]  %s61, 2048, %s63, [#allocation8], 64, 64, 4
    $region21: #{multimodal_forward.1} parent=1 // pred_fallthru
      _
    // Predicated region
    $region22: #{multimodal_forward.1} parent=1 // pred_check
      _
    $region23: #{multimodal_forward.1} parent=1 // pred_check_branch
      %70 = sbr.rel (0) target = $region25
    $region24: #{multimodal_forward.1} parent=1 // pred_region
      _
    $region25: #{multimodal_forward.1} parent=1 // pred_fallthru
      _
    // Predicated region
    $region26: #{multimodal_forward.1} parent=1 // pred_check
      _
    $region27: #{multimodal_forward.1} parent=1 // pred_check_branch
      %72 = sbr.rel (0) target = $region29
    $region28: #{multimodal_forward.1} parent=1 // pred_region
      _
    $region29: #{multimodal_forward.1} parent=1 // pred_fallthru
      _
    // Predicated region
    $region30: #{multimodal_forward.1} parent=1 // pred_check
      _
    $region31: #{multimodal_forward.1} parent=1 // pred_check_branch
      %74 = sbr.rel (0) target = $region33
    $region32: #{multimodal_forward.1} parent=1 // pred_region
      %76 = dma.done [#allocation3], 2048
    $region33: #{multimodal_forward.1} parent=1 // pred_fallthru
      _
    // Predicated region
    $region34: #{multimodal_forward.1} parent=1 // pred_check
      _
    $region35: #{multimodal_forward.1} parent=1 // pred_check_branch
      %78 = sbr.rel (0) target = $region37
    $region36: #{multimodal_forward.1} parent=1 // pred_region
      %80 = dma.done [#allocation5], 8192
    $region37: #{multimodal_forward.1} parent=1 // pred_fallthru
      _
    // Predicated region
    $region38: #{multimodal_forward.1} parent=1 // pred_check
      _
    $region39: #{multimodal_forward.1} parent=1 // pred_check_branch
      %82 = sbr.rel (0) target = $region41
    $region40: #{multimodal_forward.1} parent=1 // pred_region
      %84 = dma.done [#allocation5], 8192
    $region41: #{multimodal_forward.1} parent=1 // pred_fallthru
      _
    // Predicated region
    $region42: #{multimodal_forward.1} parent=1 // pred_check
      _
    $region43: #{multimodal_forward.1} parent=1 // pred_check_branch
      %86 = sbr.rel (0) target = $region45
    $region44: #{multimodal_forward.1} parent=1 // pred_region
      %88 = dma.done [#allocation8], 2048
    $region45: #{multimodal_forward.1} parent=1 // pred_fallthru
      _
    %v90 = vld [vmem:[%s0] sm:$0xff]
    %v91 = vld [vmem:[%s0 + $0x8] sm:$0xff]
    %v92 = vld [vmem:[%s6] sm:$0xff]
    %v93 = vld [vmem:[%s6 + $0x8] sm:$0xff]
    %v94 = vld [vmem:[#allocation2] sm:$0xff]
    %v95 = vld [vmem:[#allocation2 + $0x8] sm:$0xff]
    %v96 = vld [vmem:[#allocation2 + $0x10] sm:$0xff]
    %v97 = vld [vmem:[#allocation2 + $0x18] sm:$0xff]
    %v98 = vld [vmem:[#allocation2 + $0x20] sm:$0xff]
    %v99 = vld [vmem:[#allocation2 + $0x28] sm:$0xff]
    %v100 = vld [vmem:[#allocation2 + $0x30] sm:$0xff]
    %v101 = vld [vmem:[#allocation2 + $0x38] sm:$0xff]
    %v102 = vld [vmem:[#allocation2 + $0x40] sm:$0xff]
    %v103 = vld [vmem:[#allocation2 + $0x48] sm:$0xff]
    %v104 = vld [vmem:[#allocation2 + $0x50] sm:$0xff]
    %v105 = vld [vmem:[#allocation2 + $0x58] sm:$0xff]
    %v106 = vld [vmem:[#allocation2 + $0x60] sm:$0xff]
    %v107 = vld [vmem:[#allocation2 + $0x68] sm:$0xff]
    %v108 = vld [vmem:[#allocation2 + $0x70] sm:$0xff]
    %v109 = vld [vmem:[#allocation2 + $0x78] sm:$0xff]
    %v110 = vpack.c.bf16 %v91, %v90
    %v127 = vunpack.c.l.b16 %v94
    %v128 = vunpack.c.h.b16 %v94
    %v129 = vunpack.c.l.b16 %v95
    %v130 = vunpack.c.h.b16 %v95
    %v131 = vunpack.c.l.b16 %v96
    %v132 = vunpack.c.h.b16 %v96
    %v133 = vunpack.c.l.b16 %v97
    %v134 = vunpack.c.h.b16 %v97
    %v135 = vunpack.c.l.b16 %v98
    %v136 = vunpack.c.h.b16 %v98
    %v137 = vunpack.c.l.b16 %v99
    %v138 = vunpack.c.h.b16 %v99
    %v139 = vunpack.c.l.b16 %v100
    %v140 = vunpack.c.h.b16 %v100
    %v141 = vunpack.c.l.b16 %v101
    %v142 = vunpack.c.h.b16 %v101
    %v143 = vunpack.c.l.b16 %v102
    %v144 = vunpack.c.h.b16 %v102
    %v145 = vunpack.c.l.b16 %v103
    %v146 = vunpack.c.h.b16 %v103
    %v147 = vunpack.c.l.b16 %v104
    %v148 = vunpack.c.h.b16 %v104
    %v149 = vunpack.c.l.b16 %v105
    %v150 = vunpack.c.h.b16 %v105
    %v151 = vunpack.c.l.b16 %v106
    %v152 = vunpack.c.h.b16 %v106
    %v153 = vunpack.c.l.b16 %v107
    %v154 = vunpack.c.h.b16 %v107
    %v155 = vunpack.c.l.b16 %v108
    %v156 = vunpack.c.h.b16 %v108
    %v157 = vunpack.c.l.b16 %v109
    %v158 = vunpack.c.h.b16 %v109
    %v159 = vpack.c.b16 %v129, %v127
    %v160 = vpack.c.b16 %v130, %v128
    %v161 = vpack.c.b16 %v133, %v131
    %v162 = vpack.c.b16 %v134, %v132
    %v163 = vpack.c.b16 %v137, %v135
    %v164 = vpack.c.b16 %v138, %v136
    %v165 = vpack.c.b16 %v141, %v139
    %v166 = vpack.c.b16 %v142, %v140
    %v167 = vpack.c.b16 %v145, %v143
    %v168 = vpack.c.b16 %v146, %v144
    %v169 = vpack.c.b16 %v149, %v147
    %v170 = vpack.c.b16 %v150, %v148
    %v171 = vpack.c.b16 %v153, %v151
    %v172 = vpack.c.b16 %v154, %v152
    %v173 = vpack.c.b16 %v157, %v155
    %v174 = vpack.c.b16 %v158, %v156
    %191 = vmatpush.bf16.msra.mxu0 %v173
    %192 = vmatpush.bf16.msra.mxu0 %v171
    %193 = vmatpush.bf16.msra.mxu0 %v169
    %194 = vmatpush.bf16.msra.mxu0 %v167
    %195 = vmatpush.bf16.msra.mxu0 %v165
    %196 = vmatpush.bf16.msra.mxu0 %v163
    %197 = vmatpush.bf16.msra.mxu0 %v161
    %198 = vmatpush.bf16.msra.mxu0 %v159
    %199 = vmatmul.bf16.gmra.mxu0 %v110
    %v200 = vpop.f32.mrf.mxu0
    %v201 = vadd.f32 0.0, %v200
    %v202 = vpop.f32.mrf.mxu0
    %203 = vdwg.mxu0
    %204 = vmatpush.bf16.msra.mxu0 %v174
    %205 = vmatpush.bf16.msra.mxu0 %v172
    %206 = vmatpush.bf16.msra.mxu0 %v170
    %207 = vmatpush.bf16.msra.mxu0 %v168
    %208 = vmatpush.bf16.msra.mxu0 %v166
    %209 = vmatpush.bf16.msra.mxu0 %v164
    %210 = vmatpush.bf16.msra.mxu0 %v162
    %211 = vmatpush.bf16.msra.mxu0 %v160
    %212 = vmatmul.bf16.gmra.mxu0 %v110
    %v213 = vpop.f32.mrf.mxu0
    %v214 = vpop.f32.mrf.mxu0
    %v215 = vadd.f32 0.0, %v214
    %216 = vdwg.mxu0
    %v217 = vperm.slane %v92, 0
    %v218 = vadd.f32 %v201, %v217
    %v219 = vperm.slane %v92, 1
    %v220 = vadd.f32 %v215, %v219
    %v221 = vadd.f32 %v91, %v218
    %222 = vadd.xlane.f32.xlu0 %v221
    %v223 = vpop.xlane.xlu0 %222
    %v224 = vrcp.pop 128.0
    %v225 = vmul.f32 128.0, %v224
    %v226 = vsub.f32 1.0, %v225
    %v227 = vmul.f32 %v224, %v226
    %v228 = vadd.f32 %v224, %v227
    %vm229 = vweird.f32 %v224
    %v230 = vsel %vm229, %v224, %v228
    %v231 = vmul.f32 %v223, %v230
    %v232 = vsub.f32 %v221, %v231
    %v233 = vmul.f32 %v232, %v232
    %234 = vadd.xlane.f32.xlu0 %v233
    %v235 = vpop.xlane.xlu0 %234
    %v236 = vmul.f32 %v235, %v230
    %v237 = vadd.f32 %v236, 1e-05
    %v238 = vrsqrt.pop %v237
    %v239 = vmul.f32 %v238, %v237
    %v240 = vmul.f32 %v239, %v238
    %v241 = vmul.f32 0.5, %v240
    %v242 = vsub.f32 1.5, %v241
    %v243 = vmul.f32 %v238, %v242
    %vm244 = vweird.f32 %v237
    %vm245 = vweird.f32 %v238
    %vm246 = vmor %vm244, %vm245
    %v247 = vsel %vm246, %v238, %v243
    %v248 = vmul.f32 %v232, %v247
    %v249 = vperm.slane %v92, 2
    %v250 = vmul.f32 %v248, %v249
    %v251 = vperm.slane %v92, 3
    %v252 = vadd.f32 %v250, %v251
    %v253 = vadd.f32 %v90, %v220
    %254 = vadd.xlane.f32.xlu0 %v253
    %v255 = vpop.xlane.xlu0 %254
    %v256 = vmul.f32 %v255, %v230
    %v257 = vsub.f32 %v253, %v256
    %v258 = vmul.f32 %v257, %v257
    %259 = vadd.xlane.f32.xlu0 %v258
    %v260 = vpop.xlane.xlu0 %259
    %v261 = vmul.f32 %v260, %v230
    %v262 = vadd.f32 %v261, 1e-05
    %v263 = vrsqrt.pop %v262
    %v264 = vmul.f32 %v263, %v262
    %v265 = vmul.f32 %v264, %v263
    %v266 = vmul.f32 0.5, %v265
    %v267 = vsub.f32 1.5, %v266
    %v268 = vmul.f32 %v263, %v267
    %vm269 = vweird.f32 %v262
    %vm270 = vweird.f32 %v263
    %vm271 = vmor %vm269, %vm270
    %v272 = vsel %vm271, %v263, %v268
    %v273 = vmul.f32 %v257, %v272
    %v274 = vperm.slane %v92, 4
    %v275 = vmul.f32 %v273, %v274
    %v276 = vperm.slane %v92, 5
    %v277 = vadd.f32 %v275, %v276
    %v278 = vld [vmem:[#allocation4] sm:$0xff]
    %v279 = vld [vmem:[#allocation4 + $0x8] sm:$0xff]
    %v280 = vld [vmem:[#allocation4 + $0x10] sm:$0xff]
    %v281 = vld [vmem:[#allocation4 + $0x18] sm:$0xff]
    %v282 = vld [vmem:[#allocation4 + $0x20] sm:$0xff]
    %v283 = vld [vmem:[#allocation4 + $0x28] sm:$0xff]
    %v284 = vld [vmem:[#allocation4 + $0x30] sm:$0xff]
    %v285 = vld [vmem:[#allocation4 + $0x38] sm:$0xff]
    %v286 = vld [vmem:[#allocation4 + $0x40] sm:$0xff]
    %v287 = vld [vmem:[#allocation4 + $0x48] sm:$0xff]
    %v288 = vld [vmem:[#allocation4 + $0x50] sm:$0xff]
    %v289 = vld [vmem:[#allocation4 + $0x58] sm:$0xff]
    %v290 = vld [vmem:[#allocation4 + $0x60] sm:$0xff]
    %v291 = vld [vmem:[#allocation4 + $0x68] sm:$0xff]
    %v292 = vld [vmem:[#allocation4 + $0x70] sm:$0xff]
    %v293 = vld [vmem:[#allocation4 + $0x78] sm:$0xff]
    %v294 = vld [vmem:[#allocation4 + $0x80] sm:$0xff]
    %v295 = vld [vmem:[#allocation4 + $0x88] sm:$0xff]
    %v296 = vld [vmem:[#allocation4 + $0x90] sm:$0xff]
    %v297 = vld [vmem:[#allocation4 + $0x98] sm:$0xff]
    %v298 = vld [vmem:[#allocation4 + $0xa0] sm:$0xff]
    %v299 = vld [vmem:[#allocation4 + $0xa8] sm:$0xff]
    %v300 = vld [vmem:[#allocation4 + $0xb0] sm:$0xff]
    %v301 = vld [vmem:[#allocation4 + $0xb8] sm:$0xff]
    %v302 = vld [vmem:[#allocation4 + $0xc0] sm:$0xff]
    %v303 = vld [vmem:[#allocation4 + $0xc8] sm:$0xff]
    %v304 = vld [vmem:[#allocation4 + $0xd0] sm:$0xff]
    %v305 = vld [vmem:[#allocation4 + $0xd8] sm:$0xff]
    %v306 = vld [vmem:[#allocation4 + $0xe0] sm:$0xff]
    %v307 = vld [vmem:[#allocation4 + $0xe8] sm:$0xff]
    %v308 = vld [vmem:[#allocation4 + $0xf0] sm:$0xff]
    %v309 = vld [vmem:[#allocation4 + $0xf8] sm:$0xff]
    %v310 = vld [vmem:[#allocation4 + $0x100] sm:$0xff]
    %v311 = vld [vmem:[#allocation4 + $0x108] sm:$0xff]
    %v312 = vld [vmem:[#allocation4 + $0x110] sm:$0xff]
    %v313 = vld [vmem:[#allocation4 + $0x118] sm:$0xff]
    %v314 = vld [vmem:[#allocation4 + $0x120] sm:$0xff]
    %v315 = vld [vmem:[#allocation4 + $0x128] sm:$0xff]
    %v316 = vld [vmem:[#allocation4 + $0x130] sm:$0xff]
    %v317 = vld [vmem:[#allocation4 + $0x138] sm:$0xff]
    %v318 = vld [vmem:[#allocation4 + $0x140] sm:$0xff]
    %v319 = vld [vmem:[#allocation4 + $0x148] sm:$0xff]
    %v320 = vld [vmem:[#allocation4 + $0x150] sm:$0xff]
    %v321 = vld [vmem:[#allocation4 + $0x158] sm:$0xff]
    %v322 = vld [vmem:[#allocation4 + $0x160] sm:$0xff]
    %v323 = vld [vmem:[#allocation4 + $0x168] sm:$0xff]
    %v324 = vld [vmem:[#allocation4 + $0x170] sm:$0xff]
    %v325 = vld [vmem:[#allocation4 + $0x178] sm:$0xff]
    %v326 = vld [vmem:[#allocation4 + $0x180] sm:$0xff]
    %v327 = vld [vmem:[#allocation4 + $0x188] sm:$0xff]
    %v328 = vld [vmem:[#allocation4 + $0x190] sm:$0xff]
    %v329 = vld [vmem:[#allocation4 + $0x198] sm:$0xff]
    %v330 = vld [vmem:[#allocation4 + $0x1a0] sm:$0xff]
    %v331 = vld [vmem:[#allocation4 + $0x1a8] sm:$0xff]
    %v332 = vld [vmem:[#allocation4 + $0x1b0] sm:$0xff]
    %v333 = vld [vmem:[#allocation4 + $0x1b8] sm:$0xff]
    %v334 = vld [vmem:[#allocation4 + $0x1c0] sm:$0xff]
    %v335 = vld [vmem:[#allocation4 + $0x1c8] sm:$0xff]
    %v336 = vld [vmem:[#allocation4 + $0x1d0] sm:$0xff]
    %v337 = vld [vmem:[#allocation4 + $0x1d8] sm:$0xff]
    %v338 = vld [vmem:[#allocation4 + $0x1e0] sm:$0xff]
    %v339 = vld [vmem:[#allocation4 + $0x1e8] sm:$0xff]
    %v340 = vld [vmem:[#allocation4 + $0x1f0] sm:$0xff]
    %v341 = vld [vmem:[#allocation4 + $0x1f8] sm:$0xff]
    %v342 = vpack.c.bf16 %v277, %v252
    %v407 = vunpack.c.l.b16 %v278
    %v408 = vunpack.c.h.b16 %v278
    %v409 = vunpack.c.l.b16 %v279
    %v410 = vunpack.c.h.b16 %v279
    %v411 = vunpack.c.l.b16 %v280
    %v412 = vunpack.c.h.b16 %v280
    %v413 = vunpack.c.l.b16 %v281
    %v414 = vunpack.c.h.b16 %v281
    %v415 = vunpack.c.l.b16 %v282
    %v416 = vunpack.c.h.b16 %v282
    %v417 = vunpack.c.l.b16 %v283
    %v418 = vunpack.c.h.b16 %v283
    %v419 = vunpack.c.l.b16 %v284
    %v420 = vunpack.c.h.b16 %v284
    %v421 = vunpack.c.l.b16 %v285
    %v422 = vunpack.c.h.b16 %v285
    %v423 = vunpack.c.l.b16 %v286
    %v424 = vunpack.c.h.b16 %v286
    %v425 = vunpack.c.l.b16 %v287
    %v426 = vunpack.c.h.b16 %v287
    %v427 = vunpack.c.l.b16 %v288
    %v428 = vunpack.c.h.b16 %v288
    %v429 = vunpack.c.l.b16 %v289
    %v430 = vunpack.c.h.b16 %v289
    %v431 = vunpack.c.l.b16 %v290
    %v432 = vunpack.c.h.b16 %v290
    %v433 = vunpack.c.l.b16 %v291
    %v434 = vunpack.c.h.b16 %v291
    %v435 = vunpack.c.l.b16 %v292
    %v436 = vunpack.c.h.b16 %v292
    %v437 = vunpack.c.l.b16 %v293
    %v438 = vunpack.c.h.b16 %v293
    %v439 = vunpack.c.l.b16 %v294
    %v440 = vunpack.c.h.b16 %v294
    %v441 = vunpack.c.l.b16 %v295
    %v442 = vunpack.c.h.b16 %v295
    %v443 = vunpack.c.l.b16 %v296
    %v444 = vunpack.c.h.b16 %v296
    %v445 = vunpack.c.l.b16 %v297
    %v446 = vunpack.c.h.b16 %v297
    %v447 = vunpack.c.l.b16 %v298
    %v448 = vunpack.c.h.b16 %v298
    %v449 = vunpack.c.l.b16 %v299
    %v450 = vunpack.c.h.b16 %v299
    %v451 = vunpack.c.l.b16 %v300
    %v452 = vunpack.c.h.b16 %v300
    %v453 = vunpack.c.l.b16 %v301
    %v454 = vunpack.c.h.b16 %v301
    %v455 = vunpack.c.l.b16 %v302
    %v456 = vunpack.c.h.b16 %v302
    %v457 = vunpack.c.l.b16 %v303
    %v458 = vunpack.c.h.b16 %v303
    %v459 = vunpack.c.l.b16 %v304
    %v460 = vunpack.c.h.b16 %v304
    %v461 = vunpack.c.l.b16 %v305
    %v462 = vunpack.c.h.b16 %v305
    %v463 = vunpack.c.l.b16 %v306
    %v464 = vunpack.c.h.b16 %v306
    %v465 = vunpack.c.l.b16 %v307
    %v466 = vunpack.c.h.b16 %v307
    %v467 = vunpack.c.l.b16 %v308
    %v468 = vunpack.c.h.b16 %v308
    %v469 = vunpack.c.l.b16 %v309
    %v470 = vunpack.c.h.b16 %v309
    %v471 = vunpack.c.l.b16 %v310
    %v472 = vunpack.c.h.b16 %v310
    %v473 = vunpack.c.l.b16 %v311
    %v474 = vunpack.c.h.b16 %v311
    %v475 = vunpack.c.l.b16 %v312
    %v476 = vunpack.c.h.b16 %v312
    %v477 = vunpack.c.l.b16 %v313
    %v478 = vunpack.c.h.b16 %v313
    %v479 = vunpack.c.l.b16 %v314
    %v480 = vunpack.c.h.b16 %v314
    %v481 = vunpack.c.l.b16 %v315
    %v482 = vunpack.c.h.b16 %v315
    %v483 = vunpack.c.l.b16 %v316
    %v484 = vunpack.c.h.b16 %v316
    %v485 = vunpack.c.l.b16 %v317
    %v486 = vunpack.c.h.b16 %v317
    %v487 = vunpack.c.l.b16 %v318
    %v488 = vunpack.c.h.b16 %v318
    %v489 = vunpack.c.l.b16 %v319
    %v490 = vunpack.c.h.b16 %v319
    %v491 = vunpack.c.l.b16 %v320
    %v492 = vunpack.c.h.b16 %v320
    %v493 = vunpack.c.l.b16 %v321
    %v494 = vunpack.c.h.b16 %v321
    %v495 = vunpack.c.l.b16 %v322
    %v496 = vunpack.c.h.b16 %v322
    %v497 = vunpack.c.l.b16 %v323
    %v498 = vunpack.c.h.b16 %v323
    %v499 = vunpack.c.l.b16 %v324
    %v500 = vunpack.c.h.b16 %v324
    %v501 = vunpack.c.l.b16 %v325
    %v502 = vunpack.c.h.b16 %v325
    %v503 = vunpack.c.l.b16 %v326
    %v504 = vunpack.c.h.b16 %v326
    %v505 = vunpack.c.l.b16 %v327
    %v506 = vunpack.c.h.b16 %v327
    %v507 = vunpack.c.l.b16 %v328
    %v508 = vunpack.c.h.b16 %v328
    %v509 = vunpack.c.l.b16 %v329
    %v510 = vunpack.c.h.b16 %v329
    %v511 = vunpack.c.l.b16 %v330
    %v512 = vunpack.c.h.b16 %v330
    %v513 = vunpack.c.l.b16 %v331
    %v514 = vunpack.c.h.b16 %v331
    %v515 = vunpack.c.l.b16 %v332
    %v516 = vunpack.c.h.b16 %v332
    %v517 = vunpack.c.l.b16 %v333
    %v518 = vunpack.c.h.b16 %v333
    %v519 = vunpack.c.l.b16 %v334
    %v520 = vunpack.c.h.b16 %v334
    %v521 = vunpack.c.l.b16 %v335
    %v522 = vunpack.c.h.b16 %v335
    %v523 = vunpack.c.l.b16 %v336
    %v524 = vunpack.c.h.b16 %v336
    %v525 = vunpack.c.l.b16 %v337
    %v526 = vunpack.c.h.b16 %v337
    %v527 = vunpack.c.l.b16 %v338
    %v528 = vunpack.c.h.b16 %v338
    %v529 = vunpack.c.l.b16 %v339
    %v530 = vunpack.c.h.b16 %v339
    %v531 = vunpack.c.l.b16 %v340
    %v532 = vunpack.c.h.b16 %v340
    %v533 = vunpack.c.l.b16 %v341
    %v534 = vunpack.c.h.b16 %v341
    %v535 = vpack.c.b16 %v415, %v407
    %v536 = vpack.c.b16 %v416, %v408
    %v537 = vpack.c.b16 %v417, %v409
    %v538 = vpack.c.b16 %v418, %v410
    %v539 = vpack.c.b16 %v419, %v411
    %v540 = vpack.c.b16 %v420, %v412
    %v541 = vpack.c.b16 %v421, %v413
    %v542 = vpack.c.b16 %v422, %v414
    %v543 = vpack.c.b16 %v431, %v423
    %v544 = vpack.c.b16 %v432, %v424
    %v545 = vpack.c.b16 %v433, %v425
    %v546 = vpack.c.b16 %v434, %v426
    %v547 = vpack.c.b16 %v435, %v427
    %v548 = vpack.c.b16 %v436, %v428
    %v549 = vpack.c.b16 %v437, %v429
    %v550 = vpack.c.b16 %v438, %v430
    %v551 = vpack.c.b16 %v447, %v439
    %v552 = vpack.c.b16 %v448, %v440
    %v553 = vpack.c.b16 %v449, %v441
    %v554 = vpack.c.b16 %v450, %v442
    %v555 = vpack.c.b16 %v451, %v443
    %v556 = vpack.c.b16 %v452, %v444
    %v557 = vpack.c.b16 %v453, %v445
    %v558 = vpack.c.b16 %v454, %v446
    %v559 = vpack.c.b16 %v463, %v455
    %v560 = vpack.c.b16 %v464, %v456
    %v561 = vpack.c.b16 %v465, %v457
    %v562 = vpack.c.b16 %v466, %v458
    %v563 = vpack.c.b16 %v467, %v459
    %v564 = vpack.c.b16 %v468, %v460
    %v565 = vpack.c.b16 %v469, %v461
    %v566 = vpack.c.b16 %v470, %v462
    %v567 = vpack.c.b16 %v479, %v471
    %v568 = vpack.c.b16 %v480, %v472
    %v569 = vpack.c.b16 %v481, %v473
    %v570 = vpack.c.b16 %v482, %v474
    %v571 = vpack.c.b16 %v483, %v475
    %v572 = vpack.c.b16 %v484, %v476
    %v573 = vpack.c.b16 %v485, %v477
    %v574 = vpack.c.b16 %v486, %v478
    %v575 = vpack.c.b16 %v495, %v487
    %v576 = vpack.c.b16 %v496, %v488
    %v577 = vpack.c.b16 %v497, %v489
    %v578 = vpack.c.b16 %v498, %v490
    %v579 = vpack.c.b16 %v499, %v491
    %v580 = vpack.c.b16 %v500, %v492
    %v581 = vpack.c.b16 %v501, %v493
    %v582 = vpack.c.b16 %v502, %v494
    %v583 = vpack.c.b16 %v511, %v503
    %v584 = vpack.c.b16 %v512, %v504
    %v585 = vpack.c.b16 %v513, %v505
    %v586 = vpack.c.b16 %v514, %v506
    %v587 = vpack.c.b16 %v515, %v507
    %v588 = vpack.c.b16 %v516, %v508
    %v589 = vpack.c.b16 %v517, %v509
    %v590 = vpack.c.b16 %v518, %v510
    %v591 = vpack.c.b16 %v527, %v519
    %v592 = vpack.c.b16 %v528, %v520
    %v593 = vpack.c.b16 %v529, %v521
    %v594 = vpack.c.b16 %v530, %v522
    %v595 = vpack.c.b16 %v531, %v523
    %v596 = vpack.c.b16 %v532, %v524
    %v597 = vpack.c.b16 %v533, %v525
    %v598 = vpack.c.b16 %v534, %v526
    %663 = vmatpush.bf16.msra.mxu0 %v591
    %664 = vmatpush.bf16.msra.mxu0 %v583
    %665 = vmatpush.bf16.msra.mxu0 %v575
    %666 = vmatpush.bf16.msra.mxu0 %v567
    %667 = vmatpush.bf16.msra.mxu0 %v559
    %668 = vmatpush.bf16.msra.mxu0 %v551
    %669 = vmatpush.bf16.msra.mxu0 %v543
    %670 = vmatpush.bf16.msra.mxu0 %v535
    %671 = vmatmul.bf16.gmra.mxu0 %v342
    %v672 = vpop.f32.mrf.mxu0
    %v673 = vadd.f32 0.0, %v672
    %v674 = vpop.f32.mrf.mxu0
    %675 = vdwg.mxu0
    %676 = vmatpush.bf16.msra.mxu0 %v592
    %677 = vmatpush.bf16.msra.mxu0 %v584
    %678 = vmatpush.bf16.msra.mxu0 %v576
    %679 = vmatpush.bf16.msra.mxu0 %v568
    %680 = vmatpush.bf16.msra.mxu0 %v560
    %681 = vmatpush.bf16.msra.mxu0 %v552
    %682 = vmatpush.bf16.msra.mxu0 %v544
    %683 = vmatpush.bf16.msra.mxu0 %v536
    %684 = vmatmul.bf16.gmra.mxu0 %v342
    %v685 = vpop.f32.mrf.mxu0
    %v686 = vadd.f32 0.0, %v685
    %v687 = vpop.f32.mrf.mxu0
    %688 = vdwg.mxu0
    %689 = vmatpush.bf16.msra.mxu0 %v593
    %690 = vmatpush.bf16.msra.mxu0 %v585
    %691 = vmatpush.bf16.msra.mxu0 %v577
    %692 = vmatpush.bf16.msra.mxu0 %v569
    %693 = vmatpush.bf16.msra.mxu0 %v561
    %694 = vmatpush.bf16.msra.mxu0 %v553
    %695 = vmatpush.bf16.msra.mxu0 %v545
    %696 = vmatpush.bf16.msra.mxu0 %v537
    %697 = vmatmul.bf16.gmra.mxu0 %v342
    %v698 = vpop.f32.mrf.mxu0
    %v699 = vadd.f32 0.0, %v698
    %v700 = vpop.f32.mrf.mxu0
    %701 = vdwg.mxu0
    %702 = vmatpush.bf16.msra.mxu0 %v594
    %703 = vmatpush.bf16.msra.mxu0 %v586
    %704 = vmatpush.bf16.msra.mxu0 %v578
    %705 = vmatpush.bf16.msra.mxu0 %v570
    %706 = vmatpush.bf16.msra.mxu0 %v562
    %707 = vmatpush.bf16.msra.mxu0 %v554
    %708 = vmatpush.bf16.msra.mxu0 %v546
    %709 = vmatpush.bf16.msra.mxu0 %v538
    %710 = vmatmul.bf16.gmra.mxu0 %v342
    %v711 = vpop.f32.mrf.mxu0
    %v712 = vadd.f32 0.0, %v711
    %v713 = vpop.f32.mrf.mxu0
    %714 = vdwg.mxu0
    %715 = vmatpush.bf16.msra.mxu0 %v595
    %716 = vmatpush.bf16.msra.mxu0 %v587
    %717 = vmatpush.bf16.msra.mxu0 %v579
    %718 = vmatpush.bf16.msra.mxu0 %v571
    %719 = vmatpush.bf16.msra.mxu0 %v563
    %720 = vmatpush.bf16.msra.mxu0 %v555
    %721 = vmatpush.bf16.msra.mxu0 %v547
    %722 = vmatpush.bf16.msra.mxu0 %v539
    %723 = vmatmul.bf16.gmra.mxu0 %v342
    %v724 = vpop.f32.mrf.mxu0
    %v725 = vpop.f32.mrf.mxu0
    %v726 = vadd.f32 0.0, %v725
    %727 = vdwg.mxu0
    %728 = vmatpush.bf16.msra.mxu0 %v596
    %729 = vmatpush.bf16.msra.mxu0 %v588
    %730 = vmatpush.bf16.msra.mxu0 %v580
    %731 = vmatpush.bf16.msra.mxu0 %v572
    %732 = vmatpush.bf16.msra.mxu0 %v564
    %733 = vmatpush.bf16.msra.mxu0 %v556
    %734 = vmatpush.bf16.msra.mxu0 %v548
    %735 = vmatpush.bf16.msra.mxu0 %v540
    %736 = vmatmul.bf16.gmra.mxu0 %v342
    %v737 = vpop.f32.mrf.mxu0
    %v738 = vpop.f32.mrf.mxu0
    %v739 = vadd.f32 0.0, %v738
    %740 = vdwg.mxu0
    %741 = vmatpush.bf16.msra.mxu0 %v597
    %742 = vmatpush.bf16.msra.mxu0 %v589
    %743 = vmatpush.bf16.msra.mxu0 %v581
    %744 = vmatpush.bf16.msra.mxu0 %v573
    %745 = vmatpush.bf16.msra.mxu0 %v565
    %746 = vmatpush.bf16.msra.mxu0 %v557
    %747 = vmatpush.bf16.msra.mxu0 %v549
    %748 = vmatpush.bf16.msra.mxu0 %v541
    %749 = vmatmul.bf16.gmra.mxu0 %v342
    %v750 = vpop.f32.mrf.mxu0
    %v751 = vpop.f32.mrf.mxu0
    %v752 = vadd.f32 0.0, %v751
    %753 = vdwg.mxu0
    %754 = vmatpush.bf16.msra.mxu0 %v598
    %755 = vmatpush.bf16.msra.mxu0 %v590
    %756 = vmatpush.bf16.msra.mxu0 %v582
    %757 = vmatpush.bf16.msra.mxu0 %v574
    %758 = vmatpush.bf16.msra.mxu0 %v566
    %759 = vmatpush.bf16.msra.mxu0 %v558
    %760 = vmatpush.bf16.msra.mxu0 %v550
    %761 = vmatpush.bf16.msra.mxu0 %v542
    %762 = vmatmul.bf16.gmra.mxu0 %v342
    %v763 = vpop.f32.mrf.mxu0
    %v764 = vpop.f32.mrf.mxu0
    %v765 = vadd.f32 0.0, %v764
    %766 = vdwg.mxu0
    %v767 = vld [vmem:[%s5] sm:$0xff]
    %v769 = vperm.slane %v767, 0
    %v770 = vperm.slane %v767, 2
    %v771 = vperm.slane %v767, 4
    %v772 = vperm.slane %v767, 6
    %v777 = vperm.slane %v769, 0
    %v778 = vperm.slane %v770, 0
    %v779 = vperm.slane %v771, 0
    %v780 = vperm.slane %v772, 0
    %v781 = vadd.f32 %v673, %v777
    %v782 = vadd.f32 %v686, %v778
    %v783 = vadd.f32 %v699, %v779
    %v784 = vadd.f32 %v712, %v780
    %v785 = vmul.f32 %v781, 0.5
    %v786 = vmul.f32 %v782, 0.5
    %v787 = vmul.f32 %v783, 0.5
    %v788 = vmul.f32 %v784, 0.5
    %v789 = vmul.f32 %v781, 0.70710677
    %v790 = vmul.f32 %v782, 0.70710677
    %v791 = vmul.f32 %v783, 0.70710677
    %v792 = vmul.f32 %v784, 0.70710677
    %v793 = vmul.f32 %v789, %v789
    %v794 = vmin.f32 16.0, %v793
    %v795 = vmul.f32 %v794, 2.1237322e-06
    %v796 = vadd.f32 %v795, 0.00028619796
    %v797 = vmul.f32 %v794, %v796
    %v798 = vadd.f32 %v797, 0.0036580483
    %v799 = vmul.f32 %v794, %v798
    %v800 = vadd.f32 %v799, 0.05243302
    %v801 = vmul.f32 %v794, %v800
    %v802 = vadd.f32 %v801, 0.18741608
    %v803 = vmul.f32 %v794, %v802
    %v804 = vadd.f32 %v803, 1.1283791
    %v805 = vmul.f32 %v789, %v804
    %v806 = vmul.f32 %v794, 3.8918573e-05
    %v807 = vadd.f32 %v806, 0.001143296
    %v808 = vmul.f32 %v794, %v807
    %v809 = vadd.f32 %v808, 0.014752088
    %v810 = vmul.f32 %v794, %v809
    %v811 = vadd.f32 %v810, 0.112945676
    %v812 = vmul.f32 %v794, %v811
    %v813 = vadd.f32 %v812, 0.4994258
    %v814 = vmul.f32 %v794, %v813
    %v815 = vadd.f32 %v814, 1.0
    %v816 = vrcp.pop %v815
    %v817 = vmul.f32 %v815, %v816
    %v818 = vsub.f32 1.0, %v817
    %v819 = vmul.f32 %v816, %v818
    %v820 = vadd.f32 %v816, %v819
    %vm821 = vweird.f32 %v815
    %vm822 = vweird.f32 %v816
    %vm823 = vmor %vm821, %vm822
    %v824 = vsel %vm823, %v816, %v820
    %v825 = vand.u32 2147483647, %v815
    %vm826 = vcmp.eq.f32.partialorder %v825, 8.507059e+37
    %v827 = vand.u32 %v815, 2147483648
    %v828 = vor.u32 1.1754944e-38, %v827
    %v829 = vsel %vm826, %v828, %v824
    %v830 = vmul.f32 %v805, %v829
    %v831 = vmin.f32 %v830, 1.0
    %v832 = vmax.f32 %v831, -1.0
    %v833 = vmul.f32 %v790, %v790
    %v834 = vmin.f32 16.0, %v833
    %v835 = vmul.f32 %v834, 2.1237322e-06
    %v836 = vadd.f32 %v835, 0.00028619796
    %v837 = vmul.f32 %v834, %v836
    %v838 = vadd.f32 %v837, 0.0036580483
    %v839 = vmul.f32 %v834, %v838
    %v840 = vadd.f32 %v839, 0.05243302
    %v841 = vmul.f32 %v834, %v840
    %v842 = vadd.f32 %v841, 0.18741608
    %v843 = vmul.f32 %v834, %v842
    %v844 = vadd.f32 %v843, 1.1283791
    %v845 = vmul.f32 %v790, %v844
    %v846 = vmul.f32 %v834, 3.8918573e-05
    %v847 = vadd.f32 %v846, 0.001143296
    %v848 = vmul.f32 %v834, %v847
    %v849 = vadd.f32 %v848, 0.014752088
    %v850 = vmul.f32 %v834, %v849
    %v851 = vadd.f32 %v850, 0.112945676
    %v852 = vmul.f32 %v834, %v851
    %v853 = vadd.f32 %v852, 0.4994258
    %v854 = vmul.f32 %v834, %v853
    %v855 = vadd.f32 %v854, 1.0
    %v856 = vrcp.pop %v855
    %v857 = vmul.f32 %v855, %v856
    %v858 = vsub.f32 1.0, %v857
    %v859 = vmul.f32 %v856, %v858
    %v860 = vadd.f32 %v856, %v859
    %vm861 = vweird.f32 %v855
    %vm862 = vweird.f32 %v856
    %vm863 = vmor %vm861, %vm862
    %v864 = vsel %vm863, %v856, %v860
    %v865 = vand.u32 2147483647, %v855
    %vm866 = vcmp.eq.f32.partialorder %v865, 8.507059e+37
    %v867 = vand.u32 %v855, 2147483648
    %v868 = vor.u32 1.1754944e-38, %v867
    %v869 = vsel %vm866, %v868, %v864
    %v870 = vmul.f32 %v845, %v869
    %v871 = vmin.f32 %v870, 1.0
    %v872 = vmax.f32 %v871, -1.0
    %v873 = vmul.f32 %v791, %v791
    %v874 = vmin.f32 16.0, %v873
    %v875 = vmul.f32 %v874, 2.1237322e-06
    %v876 = vadd.f32 %v875, 0.00028619796
    %v877 = vmul.f32 %v874, %v876
    %v878 = vadd.f32 %v877, 0.0036580483
    %v879 = vmul.f32 %v874, %v878
    %v880 = vadd.f32 %v879, 0.05243302
    %v881 = vmul.f32 %v874, %v880
    %v882 = vadd.f32 %v881, 0.18741608
    %v883 = vmul.f32 %v874, %v882
    %v884 = vadd.f32 %v883, 1.1283791
    %v885 = vmul.f32 %v791, %v884
    %v886 = vmul.f32 %v874, 3.8918573e-05
    %v887 = vadd.f32 %v886, 0.001143296
    %v888 = vmul.f32 %v874, %v887
    %v889 = vadd.f32 %v888, 0.014752088
    %v890 = vmul.f32 %v874, %v889
    %v891 = vadd.f32 %v890, 0.112945676
    %v892 = vmul.f32 %v874, %v891
    %v893 = vadd.f32 %v892, 0.4994258
    %v894 = vmul.f32 %v874, %v893
    %v895 = vadd.f32 %v894, 1.0
    %v896 = vrcp.pop %v895
    %v897 = vmul.f32 %v895, %v896
    %v898 = vsub.f32 1.0, %v897
    %v899 = vmul.f32 %v896, %v898
    %v900 = vadd.f32 %v896, %v899
    %vm901 = vweird.f32 %v895
    %vm902 = vweird.f32 %v896
    %vm903 = vmor %vm901, %vm902
    %v904 = vsel %vm903, %v896, %v900
    %v905 = vand.u32 2147483647, %v895
    %vm906 = vcmp.eq.f32.partialorder %v905, 8.507059e+37
    %v907 = vand.u32 %v895, 2147483648
    %v908 = vor.u32 1.1754944e-38, %v907
    %v909 = vsel %vm906, %v908, %v904
    %v910 = vmul.f32 %v885, %v909
    %v911 = vmin.f32 %v910, 1.0
    %v912 = vmax.f32 %v911, -1.0
    %v913 = vmul.f32 %v792, %v792
    %v914 = vmin.f32 16.0, %v913
    %v915 = vmul.f32 %v914, 2.1237322e-06
    %v916 = vadd.f32 %v915, 0.00028619796
    %v917 = vmul.f32 %v914, %v916
    %v918 = vadd.f32 %v917, 0.0036580483
    %v919 = vmul.f32 %v914, %v918
    %v920 = vadd.f32 %v919, 0.05243302
    %v921 = vmul.f32 %v914, %v920
    %v922 = vadd.f32 %v921, 0.18741608
    %v923 = vmul.f32 %v914, %v922
    %v924 = vadd.f32 %v923, 1.1283791
    %v925 = vmul.f32 %v792, %v924
    %v926 = vmul.f32 %v914, 3.8918573e-05
    %v927 = vadd.f32 %v926, 0.001143296
    %v928 = vmul.f32 %v914, %v927
    %v929 = vadd.f32 %v928, 0.014752088
    %v930 = vmul.f32 %v914, %v929
    %v931 = vadd.f32 %v930, 0.112945676
    %v932 = vmul.f32 %v914, %v931
    %v933 = vadd.f32 %v932, 0.4994258
    %v934 = vmul.f32 %v914, %v933
    %v935 = vadd.f32 %v934, 1.0
    %v936 = vrcp.pop %v935
    %v937 = vmul.f32 %v935, %v936
    %v938 = vsub.f32 1.0, %v937
    %v939 = vmul.f32 %v936, %v938
    %v940 = vadd.f32 %v936, %v939
    %vm941 = vweird.f32 %v935
    %vm942 = vweird.f32 %v936
    %vm943 = vmor %vm941, %vm942
    %v944 = vsel %vm943, %v936, %v940
    %v945 = vand.u32 2147483647, %v935
    %vm946 = vcmp.eq.f32.partialorder %v945, 8.507059e+37
    %v947 = vand.u32 %v935, 2147483648
    %v948 = vor.u32 1.1754944e-38, %v947
    %v949 = vsel %vm946, %v948, %v944
    %v950 = vmul.f32 %v925, %v949
    %v951 = vmin.f32 %v950, 1.0
    %v952 = vmax.f32 %v951, -1.0
    %v953 = vadd.f32 %v832, 1.0
    %v954 = vadd.f32 %v872, 1.0
    %v955 = vadd.f32 %v912, 1.0
    %v956 = vadd.f32 %v952, 1.0
    %v957 = vmul.f32 %v785, %v953
    %v958 = vmul.f32 %v786, %v954
    %v959 = vmul.f32 %v787, %v955
    %v960 = vmul.f32 %v788, %v956
    %v961 = vperm.slane %v767, 1
    %v962 = vperm.slane %v767, 3
    %v963 = vperm.slane %v767, 5
    %v964 = vperm.slane %v767, 7
    %v969 = vperm.slane %v961, 1
    %v970 = vperm.slane %v962, 1
    %v971 = vperm.slane %v963, 1
    %v972 = vperm.slane %v964, 1
    %v973 = vadd.f32 %v726, %v969
    %v974 = vadd.f32 %v739, %v970
    %v975 = vadd.f32 %v752, %v971
    %v976 = vadd.f32 %v765, %v972
    %v977 = vmul.f32 %v973, 0.5
    %v978 = vmul.f32 %v974, 0.5
    %v979 = vmul.f32 %v975, 0.5
    %v980 = vmul.f32 %v976, 0.5
    %v981 = vmul.f32 %v973, 0.70710677
    %v982 = vmul.f32 %v974, 0.70710677
    %v983 = vmul.f32 %v975, 0.70710677
    %v984 = vmul.f32 %v976, 0.70710677
    %v985 = vmul.f32 %v981, %v981
    %v986 = vmin.f32 16.0, %v985
    %v987 = vmul.f32 %v986, 2.1237322e-06
    %v988 = vadd.f32 %v987, 0.00028619796
    %v989 = vmul.f32 %v986, %v988
    %v990 = vadd.f32 %v989, 0.0036580483
    %v991 = vmul.f32 %v986, %v990
    %v992 = vadd.f32 %v991, 0.05243302
    %v993 = vmul.f32 %v986, %v992
    %v994 = vadd.f32 %v993, 0.18741608
    %v995 = vmul.f32 %v986, %v994
    %v996 = vadd.f32 %v995, 1.1283791
    %v997 = vmul.f32 %v981, %v996
    %v998 = vmul.f32 %v986, 3.8918573e-05
    %v999 = vadd.f32 %v998, 0.001143296
    %v1000 = vmul.f32 %v986, %v999
    %v1001 = vadd.f32 %v1000, 0.014752088
    %v1002 = vmul.f32 %v986, %v1001
    %v1003 = vadd.f32 %v1002, 0.112945676
    %v1004 = vmul.f32 %v986, %v1003
    %v1005 = vadd.f32 %v1004, 0.4994258
    %v1006 = vmul.f32 %v986, %v1005
    %v1007 = vadd.f32 %v1006, 1.0
    %v1008 = vrcp.pop %v1007
    %v1009 = vmul.f32 %v1007, %v1008
    %v1010 = vsub.f32 1.0, %v1009
    %v1011 = vmul.f32 %v1008, %v1010
    %v1012 = vadd.f32 %v1008, %v1011
    %vm1013 = vweird.f32 %v1007
    %vm1014 = vweird.f32 %v1008
    %vm1015 = vmor %vm1013, %vm1014
    %v1016 = vsel %vm1015, %v1008, %v1012
    %v1017 = vand.u32 2147483647, %v1007
    %vm1018 = vcmp.eq.f32.partialorder %v1017, 8.507059e+37
    %v1019 = vand.u32 %v1007, 2147483648
    %v1020 = vor.u32 1.1754944e-38, %v1019
    %v1021 = vsel %vm1018, %v1020, %v1016
    %v1022 = vmul.f32 %v997, %v1021
    %v1023 = vmin.f32 %v1022, 1.0
    %v1024 = vmax.f32 %v1023, -1.0
    %v1025 = vmul.f32 %v982, %v982
    %v1026 = vmin.f32 16.0, %v1025
    %v1027 = vmul.f32 %v1026, 2.1237322e-06
    %v1028 = vadd.f32 %v1027, 0.00028619796
    %v1029 = vmul.f32 %v1026, %v1028
    %v1030 = vadd.f32 %v1029, 0.0036580483
    %v1031 = vmul.f32 %v1026, %v1030
    %v1032 = vadd.f32 %v1031, 0.05243302
    %v1033 = vmul.f32 %v1026, %v1032
    %v1034 = vadd.f32 %v1033, 0.18741608
    %v1035 = vmul.f32 %v1026, %v1034
    %v1036 = vadd.f32 %v1035, 1.1283791
    %v1037 = vmul.f32 %v982, %v1036
    %v1038 = vmul.f32 %v1026, 3.8918573e-05
    %v1039 = vadd.f32 %v1038, 0.001143296
    %v1040 = vmul.f32 %v1026, %v1039
    %v1041 = vadd.f32 %v1040, 0.014752088
    %v1042 = vmul.f32 %v1026, %v1041
    %v1043 = vadd.f32 %v1042, 0.112945676
    %v1044 = vmul.f32 %v1026, %v1043
    %v1045 = vadd.f32 %v1044, 0.4994258
    %v1046 = vmul.f32 %v1026, %v1045
    %v1047 = vadd.f32 %v1046, 1.0
    %v1048 = vrcp.pop %v1047
    %v1049 = vmul.f32 %v1047, %v1048
    %v1050 = vsub.f32 1.0, %v1049
    %v1051 = vmul.f32 %v1048, %v1050
    %v1052 = vadd.f32 %v1048, %v1051
    %vm1053 = vweird.f32 %v1047
    %vm1054 = vweird.f32 %v1048
    %vm1055 = vmor %vm1053, %vm1054
    %v1056 = vsel %vm1055, %v1048, %v1052
    %v1057 = vand.u32 2147483647, %v1047
    %vm1058 = vcmp.eq.f32.partialorder %v1057, 8.507059e+37
    %v1059 = vand.u32 %v1047, 2147483648
    %v1060 = vor.u32 1.1754944e-38, %v1059
    %v1061 = vsel %vm1058, %v1060, %v1056
    %v1062 = vmul.f32 %v1037, %v1061
    %v1063 = vmin.f32 %v1062, 1.0
    %v1064 = vmax.f32 %v1063, -1.0
    %v1065 = vmul.f32 %v983, %v983
    %v1066 = vmin.f32 16.0, %v1065
    %v1067 = vmul.f32 %v1066, 2.1237322e-06
    %v1068 = vadd.f32 %v1067, 0.00028619796
    %v1069 = vmul.f32 %v1066, %v1068
    %v1070 = vadd.f32 %v1069, 0.0036580483
    %v1071 = vmul.f32 %v1066, %v1070
    %v1072 = vadd.f32 %v1071, 0.05243302
    %v1073 = vmul.f32 %v1066, %v1072
    %v1074 = vadd.f32 %v1073, 0.18741608
    %v1075 = vmul.f32 %v1066, %v1074
    %v1076 = vadd.f32 %v1075, 1.1283791
    %v1077 = vmul.f32 %v983, %v1076
    %v1078 = vmul.f32 %v1066, 3.8918573e-05
    %v1079 = vadd.f32 %v1078, 0.001143296
    %v1080 = vmul.f32 %v1066, %v1079
    %v1081 = vadd.f32 %v1080, 0.014752088
    %v1082 = vmul.f32 %v1066, %v1081
    %v1083 = vadd.f32 %v1082, 0.112945676
    %v1084 = vmul.f32 %v1066, %v1083
    %v1085 = vadd.f32 %v1084, 0.4994258
    %v1086 = vmul.f32 %v1066, %v1085
    %v1087 = vadd.f32 %v1086, 1.0
    %v1088 = vrcp.pop %v1087
    %v1089 = vmul.f32 %v1087, %v1088
    %v1090 = vsub.f32 1.0, %v1089
    %v1091 = vmul.f32 %v1088, %v1090
    %v1092 = vadd.f32 %v1088, %v1091
    %vm1093 = vweird.f32 %v1087
    %vm1094 = vweird.f32 %v1088
    %vm1095 = vmor %vm1093, %vm1094
    %v1096 = vsel %vm1095, %v1088, %v1092
    %v1097 = vand.u32 2147483647, %v1087
    %vm1098 = vcmp.eq.f32.partialorder %v1097, 8.507059e+37
    %v1099 = vand.u32 %v1087, 2147483648
    %v1100 = vor.u32 1.1754944e-38, %v1099
    %v1101 = vsel %vm1098, %v1100, %v1096
    %v1102 = vmul.f32 %v1077, %v1101
    %v1103 = vmin.f32 %v1102, 1.0
    %v1104 = vmax.f32 %v1103, -1.0
    %v1105 = vmul.f32 %v984, %v984
    %v1106 = vmin.f32 16.0, %v1105
    %v1107 = vmul.f32 %v1106, 2.1237322e-06
    %v1108 = vadd.f32 %v1107, 0.00028619796
    %v1109 = vmul.f32 %v1106, %v1108
    %v1110 = vadd.f32 %v1109, 0.0036580483
    %v1111 = vmul.f32 %v1106, %v1110
    %v1112 = vadd.f32 %v1111, 0.05243302
    %v1113 = vmul.f32 %v1106, %v1112
    %v1114 = vadd.f32 %v1113, 0.18741608
    %v1115 = vmul.f32 %v1106, %v1114
    %v1116 = vadd.f32 %v1115, 1.1283791
    %v1117 = vmul.f32 %v984, %v1116
    %v1118 = vmul.f32 %v1106, 3.8918573e-05
    %v1119 = vadd.f32 %v1118, 0.001143296
    %v1120 = vmul.f32 %v1106, %v1119
    %v1121 = vadd.f32 %v1120, 0.014752088
    %v1122 = vmul.f32 %v1106, %v1121
    %v1123 = vadd.f32 %v1122, 0.112945676
    %v1124 = vmul.f32 %v1106, %v1123
    %v1125 = vadd.f32 %v1124, 0.4994258
    %v1126 = vmul.f32 %v1106, %v1125
    %v1127 = vadd.f32 %v1126, 1.0
    %v1128 = vrcp.pop %v1127
    %v1129 = vmul.f32 %v1127, %v1128
    %v1130 = vsub.f32 1.0, %v1129
    %v1131 = vmul.f32 %v1128, %v1130
    %v1132 = vadd.f32 %v1128, %v1131
    %vm1133 = vweird.f32 %v1127
    %vm1134 = vweird.f32 %v1128
    %vm1135 = vmor %vm1133, %vm1134
    %v1136 = vsel %vm1135, %v1128, %v1132
    %v1137 = vand.u32 2147483647, %v1127
    %vm1138 = vcmp.eq.f32.partialorder %v1137, 8.507059e+37
    %v1139 = vand.u32 %v1127, 2147483648
    %v1140 = vor.u32 1.1754944e-38, %v1139
    %v1141 = vsel %vm1138, %v1140, %v1136
    %v1142 = vmul.f32 %v1117, %v1141
    %v1143 = vmin.f32 %v1142, 1.0
    %v1144 = vmax.f32 %v1143, -1.0
    %v1145 = vadd.f32 %v1024, 1.0
    %v1146 = vadd.f32 %v1064, 1.0
    %v1147 = vadd.f32 %v1104, 1.0
    %v1148 = vadd.f32 %v1144, 1.0
    %v1149 = vmul.f32 %v977, %v1145
    %v1150 = vmul.f32 %v978, %v1146
    %v1151 = vmul.f32 %v979, %v1147
    %v1152 = vmul.f32 %v980, %v1148
    %v1153 = vld [vmem:[#allocation6] sm:$0xff]
    %v1154 = vld [vmem:[#allocation6 + $0x8] sm:$0xff]
    %v1155 = vld [vmem:[#allocation6 + $0x10] sm:$0xff]
    %v1156 = vld [vmem:[#allocation6 + $0x18] sm:$0xff]
    %v1157 = vld [vmem:[#allocation6 + $0x20] sm:$0xff]
    %v1158 = vld [vmem:[#allocation6 + $0x28] sm:$0xff]
    %v1159 = vld [vmem:[#allocation6 + $0x30] sm:$0xff]
    %v1160 = vld [vmem:[#allocation6 + $0x38] sm:$0xff]
    %v1161 = vld [vmem:[#allocation6 + $0x40] sm:$0xff]
    %v1162 = vld [vmem:[#allocation6 + $0x48] sm:$0xff]
    %v1163 = vld [vmem:[#allocation6 + $0x50] sm:$0xff]
    %v1164 = vld [vmem:[#allocation6 + $0x58] sm:$0xff]
    %v1165 = vld [vmem:[#allocation6 + $0x60] sm:$0xff]
    %v1166 = vld [vmem:[#allocation6 + $0x68] sm:$0xff]
    %v1167 = vld [vmem:[#allocation6 + $0x70] sm:$0xff]
    %v1168 = vld [vmem:[#allocation6 + $0x78] sm:$0xff]
    %v1169 = vld [vmem:[#allocation6 + $0x80] sm:$0xff]
    %v1170 = vld [vmem:[#allocation6 + $0x88] sm:$0xff]
    %v1171 = vld [vmem:[#allocation6 + $0x90] sm:$0xff]
    %v1172 = vld [vmem:[#allocation6 + $0x98] sm:$0xff]
    %v1173 = vld [vmem:[#allocation6 + $0xa0] sm:$0xff]
    %v1174 = vld [vmem:[#allocation6 + $0xa8] sm:$0xff]
    %v1175 = vld [vmem:[#allocation6 + $0xb0] sm:$0xff]
    %v1176 = vld [vmem:[#allocation6 + $0xb8] sm:$0xff]
    %v1177 = vld [vmem:[#allocation6 + $0xc0] sm:$0xff]
    %v1178 = vld [vmem:[#allocation6 + $0xc8] sm:$0xff]
    %v1179 = vld [vmem:[#allocation6 + $0xd0] sm:$0xff]
    %v1180 = vld [vmem:[#allocation6 + $0xd8] sm:$0xff]
    %v1181 = vld [vmem:[#allocation6 + $0xe0] sm:$0xff]
    %v1182 = vld [vmem:[#allocation6 + $0xe8] sm:$0xff]
    %v1183 = vld [vmem:[#allocation6 + $0xf0] sm:$0xff]
    %v1184 = vld [vmem:[#allocation6 + $0xf8] sm:$0xff]
    %v1185 = vld [vmem:[#allocation6 + $0x100] sm:$0xff]
    %v1186 = vld [vmem:[#allocation6 + $0x108] sm:$0xff]
    %v1187 = vld [vmem:[#allocation6 + $0x110] sm:$0xff]
    %v1188 = vld [vmem:[#allocation6 + $0x118] sm:$0xff]
    %v1189 = vld [vmem:[#allocation6 + $0x120] sm:$0xff]
    %v1190 = vld [vmem:[#allocation6 + $0x128] sm:$0xff]
    %v1191 = vld [vmem:[#allocation6 + $0x130] sm:$0xff]
    %v1192 = vld [vmem:[#allocation6 + $0x138] sm:$0xff]
    %v1193 = vld [vmem:[#allocation6 + $0x140] sm:$0xff]
    %v1194 = vld [vmem:[#allocation6 + $0x148] sm:$0xff]
    %v1195 = vld [vmem:[#allocation6 + $0x150] sm:$0xff]
    %v1196 = vld [vmem:[#allocation6 + $0x158] sm:$0xff]
    %v1197 = vld [vmem:[#allocation6 + $0x160] sm:$0xff]
    %v1198 = vld [vmem:[#allocation6 + $0x168] sm:$0xff]
    %v1199 = vld [vmem:[#allocation6 + $0x170] sm:$0xff]
    %v1200 = vld [vmem:[#allocation6 + $0x178] sm:$0xff]
    %v1201 = vld [vmem:[#allocation6 + $0x180] sm:$0xff]
    %v1202 = vld [vmem:[#allocation6 + $0x188] sm:$0xff]
    %v1203 = vld [vmem:[#allocation6 + $0x190] sm:$0xff]
    %v1204 = vld [vmem:[#allocation6 + $0x198] sm:$0xff]
    %v1205 = vld [vmem:[#allocation6 + $0x1a0] sm:$0xff]
    %v1206 = vld [vmem:[#allocation6 + $0x1a8] sm:$0xff]
    %v1207 = vld [vmem:[#allocation6 + $0x1b0] sm:$0xff]
    %v1208 = vld [vmem:[#allocation6 + $0x1b8] sm:$0xff]
    %v1209 = vld [vmem:[#allocation6 + $0x1c0] sm:$0xff]
    %v1210 = vld [vmem:[#allocation6 + $0x1c8] sm:$0xff]
    %v1211 = vld [vmem:[#allocation6 + $0x1d0] sm:$0xff]
    %v1212 = vld [vmem:[#allocation6 + $0x1d8] sm:$0xff]
    %v1213 = vld [vmem:[#allocation6 + $0x1e0] sm:$0xff]
    %v1214 = vld [vmem:[#allocation6 + $0x1e8] sm:$0xff]
    %v1215 = vld [vmem:[#allocation6 + $0x1f0] sm:$0xff]
    %v1216 = vld [vmem:[#allocation6 + $0x1f8] sm:$0xff]
    %v1217 = vpack.c.bf16 %v1149, %v957
    %v1218 = vpack.c.bf16 %v1150, %v958
    %v1219 = vpack.c.bf16 %v1151, %v959
    %v1220 = vpack.c.bf16 %v1152, %v960
    %v1285 = vunpack.c.l.b16 %v1153
    %v1286 = vunpack.c.h.b16 %v1153
    %v1287 = vunpack.c.l.b16 %v1154
    %v1288 = vunpack.c.h.b16 %v1154
    %v1289 = vunpack.c.l.b16 %v1155
    %v1290 = vunpack.c.h.b16 %v1155
    %v1291 = vunpack.c.l.b16 %v1156
    %v1292 = vunpack.c.h.b16 %v1156
    %v1293 = vunpack.c.l.b16 %v1157
    %v1294 = vunpack.c.h.b16 %v1157
    %v1295 = vunpack.c.l.b16 %v1158
    %v1296 = vunpack.c.h.b16 %v1158
    %v1297 = vunpack.c.l.b16 %v1159
    %v1298 = vunpack.c.h.b16 %v1159
    %v1299 = vunpack.c.l.b16 %v1160
    %v1300 = vunpack.c.h.b16 %v1160
    %v1301 = vunpack.c.l.b16 %v1161
    %v1302 = vunpack.c.h.b16 %v1161
    %v1303 = vunpack.c.l.b16 %v1162
    %v1304 = vunpack.c.h.b16 %v1162
    %v1305 = vunpack.c.l.b16 %v1163
    %v1306 = vunpack.c.h.b16 %v1163
    %v1307 = vunpack.c.l.b16 %v1164
    %v1308 = vunpack.c.h.b16 %v1164
    %v1309 = vunpack.c.l.b16 %v1165
    %v1310 = vunpack.c.h.b16 %v1165
    %v1311 = vunpack.c.l.b16 %v1166
    %v1312 = vunpack.c.h.b16 %v1166
    %v1313 = vunpack.c.l.b16 %v1167
    %v1314 = vunpack.c.h.b16 %v1167
    %v1315 = vunpack.c.l.b16 %v1168
    %v1316 = vunpack.c.h.b16 %v1168
    %v1317 = vunpack.c.l.b16 %v1169
    %v1318 = vunpack.c.h.b16 %v1169
    %v1319 = vunpack.c.l.b16 %v1170
    %v1320 = vunpack.c.h.b16 %v1170
    %v1321 = vunpack.c.l.b16 %v1171
    %v1322 = vunpack.c.h.b16 %v1171
    %v1323 = vunpack.c.l.b16 %v1172
    %v1324 = vunpack.c.h.b16 %v1172
    %v1325 = vunpack.c.l.b16 %v1173
    %v1326 = vunpack.c.h.b16 %v1173
    %v1327 = vunpack.c.l.b16 %v1174
    %v1328 = vunpack.c.h.b16 %v1174
    %v1329 = vunpack.c.l.b16 %v1175
    %v1330 = vunpack.c.h.b16 %v1175
    %v1331 = vunpack.c.l.b16 %v1176
    %v1332 = vunpack.c.h.b16 %v1176
    %v1333 = vunpack.c.l.b16 %v1177
    %v1334 = vunpack.c.h.b16 %v1177
    %v1335 = vunpack.c.l.b16 %v1178
    %v1336 = vunpack.c.h.b16 %v1178
    %v1337 = vunpack.c.l.b16 %v1179
    %v1338 = vunpack.c.h.b16 %v1179
    %v1339 = vunpack.c.l.b16 %v1180
    %v1340 = vunpack.c.h.b16 %v1180
    %v1341 = vunpack.c.l.b16 %v1181
    %v1342 = vunpack.c.h.b16 %v1181
    %v1343 = vunpack.c.l.b16 %v1182
    %v1344 = vunpack.c.h.b16 %v1182
    %v1345 = vunpack.c.l.b16 %v1183
    %v1346 = vunpack.c.h.b16 %v1183
    %v1347 = vunpack.c.l.b16 %v1184
    %v1348 = vunpack.c.h.b16 %v1184
    %v1349 = vunpack.c.l.b16 %v1185
    %v1350 = vunpack.c.h.b16 %v1185
    %v1351 = vunpack.c.l.b16 %v1186
    %v1352 = vunpack.c.h.b16 %v1186
    %v1353 = vunpack.c.l.b16 %v1187
    %v1354 = vunpack.c.h.b16 %v1187
    %v1355 = vunpack.c.l.b16 %v1188
    %v1356 = vunpack.c.h.b16 %v1188
    %v1357 = vunpack.c.l.b16 %v1189
    %v1358 = vunpack.c.h.b16 %v1189
    %v1359 = vunpack.c.l.b16 %v1190
    %v1360 = vunpack.c.h.b16 %v1190
    %v1361 = vunpack.c.l.b16 %v1191
    %v1362 = vunpack.c.h.b16 %v1191
    %v1363 = vunpack.c.l.b16 %v1192
    %v1364 = vunpack.c.h.b16 %v1192
    %v1365 = vunpack.c.l.b16 %v1193
    %v1366 = vunpack.c.h.b16 %v1193
    %v1367 = vunpack.c.l.b16 %v1194
    %v1368 = vunpack.c.h.b16 %v1194
    %v1369 = vunpack.c.l.b16 %v1195
    %v1370 = vunpack.c.h.b16 %v1195
    %v1371 = vunpack.c.l.b16 %v1196
    %v1372 = vunpack.c.h.b16 %v1196
    %v1373 = vunpack.c.l.b16 %v1197
    %v1374 = vunpack.c.h.b16 %v1197
    %v1375 = vunpack.c.l.b16 %v1198
    %v1376 = vunpack.c.h.b16 %v1198
    %v1377 = vunpack.c.l.b16 %v1199
    %v1378 = vunpack.c.h.b16 %v1199
    %v1379 = vunpack.c.l.b16 %v1200
    %v1380 = vunpack.c.h.b16 %v1200
    %v1381 = vunpack.c.l.b16 %v1201
    %v1382 = vunpack.c.h.b16 %v1201
    %v1383 = vunpack.c.l.b16 %v1202
    %v1384 = vunpack.c.h.b16 %v1202
    %v1385 = vunpack.c.l.b16 %v1203
    %v1386 = vunpack.c.h.b16 %v1203
    %v1387 = vunpack.c.l.b16 %v1204
    %v1388 = vunpack.c.h.b16 %v1204
    %v1389 = vunpack.c.l.b16 %v1205
    %v1390 = vunpack.c.h.b16 %v1205
    %v1391 = vunpack.c.l.b16 %v1206
    %v1392 = vunpack.c.h.b16 %v1206
    %v1393 = vunpack.c.l.b16 %v1207
    %v1394 = vunpack.c.h.b16 %v1207
    %v1395 = vunpack.c.l.b16 %v1208
    %v1396 = vunpack.c.h.b16 %v1208
    %v1397 = vunpack.c.l.b16 %v1209
    %v1398 = vunpack.c.h.b16 %v1209
    %v1399 = vunpack.c.l.b16 %v1210
    %v1400 = vunpack.c.h.b16 %v1210
    %v1401 = vunpack.c.l.b16 %v1211
    %v1402 = vunpack.c.h.b16 %v1211
    %v1403 = vunpack.c.l.b16 %v1212
    %v1404 = vunpack.c.h.b16 %v1212
    %v1405 = vunpack.c.l.b16 %v1213
    %v1406 = vunpack.c.h.b16 %v1213
    %v1407 = vunpack.c.l.b16 %v1214
    %v1408 = vunpack.c.h.b16 %v1214
    %v1409 = vunpack.c.l.b16 %v1215
    %v1410 = vunpack.c.h.b16 %v1215
    %v1411 = vunpack.c.l.b16 %v1216
    %v1412 = vunpack.c.h.b16 %v1216
    %v1413 = vpack.c.b16 %v1287, %v1285
    %v1414 = vpack.c.b16 %v1288, %v1286
    %v1415 = vpack.c.b16 %v1291, %v1289
    %v1416 = vpack.c.b16 %v1292, %v1290
    %v1417 = vpack.c.b16 %v1295, %v1293
    %v1418 = vpack.c.b16 %v1296, %v1294
    %v1419 = vpack.c.b16 %v1299, %v1297
    %v1420 = vpack.c.b16 %v1300, %v1298
    %v1421 = vpack.c.b16 %v1303, %v1301
    %v1422 = vpack.c.b16 %v1304, %v1302
    %v1423 = vpack.c.b16 %v1307, %v1305
    %v1424 = vpack.c.b16 %v1308, %v1306
    %v1425 = vpack.c.b16 %v1311, %v1309
    %v1426 = vpack.c.b16 %v1312, %v1310
    %v1427 = vpack.c.b16 %v1315, %v1313
    %v1428 = vpack.c.b16 %v1316, %v1314
    %v1429 = vpack.c.b16 %v1319, %v1317
    %v1430 = vpack.c.b16 %v1320, %v1318
    %v1431 = vpack.c.b16 %v1323, %v1321
    %v1432 = vpack.c.b16 %v1324, %v1322
    %v1433 = vpack.c.b16 %v1327, %v1325
    %v1434 = vpack.c.b16 %v1328, %v1326
    %v1435 = vpack.c.b16 %v1331, %v1329
    %v1436 = vpack.c.b16 %v1332, %v1330
    %v1437 = vpack.c.b16 %v1335, %v1333
    %v1438 = vpack.c.b16 %v1336, %v1334
    %v1439 = vpack.c.b16 %v1339, %v1337
    %v1440 = vpack.c.b16 %v1340, %v1338
    %v1441 = vpack.c.b16 %v1343, %v1341
    %v1442 = vpack.c.b16 %v1344, %v1342
    %v1443 = vpack.c.b16 %v1347, %v1345
    %v1444 = vpack.c.b16 %v1348, %v1346
    %v1445 = vpack.c.b16 %v1351, %v1349
    %v1446 = vpack.c.b16 %v1352, %v1350
    %v1447 = vpack.c.b16 %v1355, %v1353
    %v1448 = vpack.c.b16 %v1356, %v1354
    %v1449 = vpack.c.b16 %v1359, %v1357
    %v1450 = vpack.c.b16 %v1360, %v1358
    %v1451 = vpack.c.b16 %v1363, %v1361
    %v1452 = vpack.c.b16 %v1364, %v1362
    %v1453 = vpack.c.b16 %v1367, %v1365
    %v1454 = vpack.c.b16 %v1368, %v1366
    %v1455 = vpack.c.b16 %v1371, %v1369
    %v1456 = vpack.c.b16 %v1372, %v1370
    %v1457 = vpack.c.b16 %v1375, %v1373
    %v1458 = vpack.c.b16 %v1376, %v1374
    %v1459 = vpack.c.b16 %v1379, %v1377
    %v1460 = vpack.c.b16 %v1380, %v1378
    %v1461 = vpack.c.b16 %v1383, %v1381
    %v1462 = vpack.c.b16 %v1384, %v1382
    %v1463 = vpack.c.b16 %v1387, %v1385
    %v1464 = vpack.c.b16 %v1388, %v1386
    %v1465 = vpack.c.b16 %v1391, %v1389
    %v1466 = vpack.c.b16 %v1392, %v1390
    %v1467 = vpack.c.b16 %v1395, %v1393
    %v1468 = vpack.c.b16 %v1396, %v1394
    %v1469 = vpack.c.b16 %v1399, %v1397
    %v1470 = vpack.c.b16 %v1400, %v1398
    %v1471 = vpack.c.b16 %v1403, %v1401
    %v1472 = vpack.c.b16 %v1404, %v1402
    %v1473 = vpack.c.b16 %v1407, %v1405
    %v1474 = vpack.c.b16 %v1408, %v1406
    %v1475 = vpack.c.b16 %v1411, %v1409
    %v1476 = vpack.c.b16 %v1412, %v1410
    %1541 = vmatpush.bf16.msra.mxu0 %v1427
    %1542 = vmatpush.bf16.msra.mxu0 %v1425
    %1543 = vmatpush.bf16.msra.mxu0 %v1423
    %1544 = vmatpush.bf16.msra.mxu0 %v1421
    %1545 = vmatpush.bf16.msra.mxu0 %v1419
    %1546 = vmatpush.bf16.msra.mxu0 %v1417
    %1547 = vmatpush.bf16.msra.mxu0 %v1415
    %1548 = vmatpush.bf16.msra.mxu0 %v1413
    %1549 = vmatmul.bf16.gmra.mxu0 %v1217
    %v1550 = vpop.f32.mrf.mxu0
    %v1551 = vadd.f32 0.0, %v1550
    %v1552 = vpop.f32.mrf.mxu0
    %1553 = vdwg.mxu0
    %1554 = vmatpush.bf16.msra.mxu0 %v1443
    %1555 = vmatpush.bf16.msra.mxu0 %v1441
    %1556 = vmatpush.bf16.msra.mxu0 %v1439
    %1557 = vmatpush.bf16.msra.mxu0 %v1437
    %1558 = vmatpush.bf16.msra.mxu0 %v1435
    %1559 = vmatpush.bf16.msra.mxu0 %v1433
    %1560 = vmatpush.bf16.msra.mxu0 %v1431
    %1561 = vmatpush.bf16.msra.mxu0 %v1429
    %1562 = vmatmul.bf16.gmra.mxu0 %v1218
    %v1563 = vpop.f32.mrf.mxu0
    %v1564 = vadd.f32 %v1551, %v1563
    %v1565 = vpop.f32.mrf.mxu0
    %1566 = vdwg.mxu0
    %1567 = vmatpush.bf16.msra.mxu0 %v1459
    %1568 = vmatpush.bf16.msra.mxu0 %v1457
    %1569 = vmatpush.bf16.msra.mxu0 %v1455
    %1570 = vmatpush.bf16.msra.mxu0 %v1453
    %1571 = vmatpush.bf16.msra.mxu0 %v1451
    %1572 = vmatpush.bf16.msra.mxu0 %v1449
    %1573 = vmatpush.bf16.msra.mxu0 %v1447
    %1574 = vmatpush.bf16.msra.mxu0 %v1445
    %1575 = vmatmul.bf16.gmra.mxu0 %v1219
    %v1576 = vpop.f32.mrf.mxu0
    %v1577 = vadd.f32 %v1564, %v1576
    %v1578 = vpop.f32.mrf.mxu0
    %1579 = vdwg.mxu0
    %1580 = vmatpush.bf16.msra.mxu0 %v1475
    %1581 = vmatpush.bf16.msra.mxu0 %v1473
    %1582 = vmatpush.bf16.msra.mxu0 %v1471
    %1583 = vmatpush.bf16.msra.mxu0 %v1469
    %1584 = vmatpush.bf16.msra.mxu0 %v1467
    %1585 = vmatpush.bf16.msra.mxu0 %v1465
    %1586 = vmatpush.bf16.msra.mxu0 %v1463
    %1587 = vmatpush.bf16.msra.mxu0 %v1461
    %1588 = vmatmul.bf16.gmra.mxu0 %v1220
    %v1589 = vpop.f32.mrf.mxu0
    %v1590 = vadd.f32 %v1577, %v1589
    %v1591 = vpop.f32.mrf.mxu0
    %1592 = vdwg.mxu0
    %1593 = vmatpush.bf16.msra.mxu0 %v1428
    %1594 = vmatpush.bf16.msra.mxu0 %v1426
    %1595 = vmatpush.bf16.msra.mxu0 %v1424
    %1596 = vmatpush.bf16.msra.mxu0 %v1422
    %1597 = vmatpush.bf16.msra.mxu0 %v1420
    %1598 = vmatpush.bf16.msra.mxu0 %v1418
    %1599 = vmatpush.bf16.msra.mxu0 %v1416
    %1600 = vmatpush.bf16.msra.mxu0 %v1414
    %1601 = vmatmul.bf16.gmra.mxu0 %v1217
    %v1602 = vpop.f32.mrf.mxu0
    %v1603 = vpop.f32.mrf.mxu0
    %v1604 = vadd.f32 0.0, %v1603
    %1605 = vdwg.mxu0
    %1606 = vmatpush.bf16.msra.mxu0 %v1444
    %1607 = vmatpush.bf16.msra.mxu0 %v1442
    %1608 = vmatpush.bf16.msra.mxu0 %v1440
    %1609 = vmatpush.bf16.msra.mxu0 %v1438
    %1610 = vmatpush.bf16.msra.mxu0 %v1436
    %1611 = vmatpush.bf16.msra.mxu0 %v1434
    %1612 = vmatpush.bf16.msra.mxu0 %v1432
    %1613 = vmatpush.bf16.msra.mxu0 %v1430
    %1614 = vmatmul.bf16.gmra.mxu0 %v1218
    %v1615 = vpop.f32.mrf.mxu0
    %v1616 = vpop.f32.mrf.mxu0
    %v1617 = vadd.f32 %v1604, %v1616
    %1618 = vdwg.mxu0
    %1619 = vmatpush.bf16.msra.mxu0 %v1460
    %1620 = vmatpush.bf16.msra.mxu0 %v1458
    %1621 = vmatpush.bf16.msra.mxu0 %v1456
    %1622 = vmatpush.bf16.msra.mxu0 %v1454
    %1623 = vmatpush.bf16.msra.mxu0 %v1452
    %1624 = vmatpush.bf16.msra.mxu0 %v1450
    %1625 = vmatpush.bf16.msra.mxu0 %v1448
    %1626 = vmatpush.bf16.msra.mxu0 %v1446
    %1627 = vmatmul.bf16.gmra.mxu0 %v1219
    %v1628 = vpop.f32.mrf.mxu0
    %v1629 = vpop.f32.mrf.mxu0
    %v1630 = vadd.f32 %v1617, %v1629
    %1631 = vdwg.mxu0
    %1632 = vmatpush.bf16.msra.mxu0 %v1476
    %1633 = vmatpush.bf16.msra.mxu0 %v1474
    %1634 = vmatpush.bf16.msra.mxu0 %v1472
    %1635 = vmatpush.bf16.msra.mxu0 %v1470
    %1636 = vmatpush.bf16.msra.mxu0 %v1468
    %1637 = vmatpush.bf16.msra.mxu0 %v1466
    %1638 = vmatpush.bf16.msra.mxu0 %v1464
    %1639 = vmatpush.bf16.msra.mxu0 %v1462
    %1640 = vmatmul.bf16.gmra.mxu0 %v1220
    %v1641 = vpop.f32.mrf.mxu0
    %v1642 = vpop.f32.mrf.mxu0
    %v1643 = vadd.f32 %v1630, %v1642
    %1644 = vdwg.mxu0
    %v1645 = vperm.slane %v92, 6
    %v1646 = vadd.f32 %v1590, %v1645
    %v1647 = vperm.slane %v92, 7
    %v1648 = vadd.f32 %v1643, %v1647
    %v1649 = vadd.f32 %v252, %v1646
    %1650 = vadd.xlane.f32.xlu0 %v1649
    %v1651 = vpop.xlane.xlu0 %1650
    %v1652 = vmul.f32 %v1651, %v230
    %v1653 = vsub.f32 %v1649, %v1652
    %v1654 = vmul.f32 %v1653, %v1653
    %1655 = vadd.xlane.f32.xlu0 %v1654
    %v1656 = vpop.xlane.xlu0 %1655
    %v1657 = vmul.f32 %v1656, %v230
    %v1658 = vadd.f32 %v1657, 1e-05
    %v1659 = vrsqrt.pop %v1658
    %v1660 = vmul.f32 %v1659, %v1658
    %v1661 = vmul.f32 %v1660, %v1659
    %v1662 = vmul.f32 0.5, %v1661
    %v1663 = vsub.f32 1.5, %v1662
    %v1664 = vmul.f32 %v1659, %v1663
    %vm1665 = vweird.f32 %v1658
    %vm1666 = vweird.f32 %v1659
    %vm1667 = vmor %vm1665, %vm1666
    %v1668 = vsel %vm1667, %v1659, %v1664
    %v1669 = vmul.f32 %v1653, %v1668
    %v1670 = vperm.slane %v93, 0
    %v1671 = vmul.f32 %v1669, %v1670
    %v1672 = vperm.slane %v93, 1
    %v1673 = vadd.f32 %v1671, %v1672
    %v1674 = vadd.f32 %v277, %v1648
    %1675 = vadd.xlane.f32.xlu0 %v1674
    %v1676 = vpop.xlane.xlu0 %1675
    %v1677 = vmul.f32 %v1676, %v230
    %v1678 = vsub.f32 %v1674, %v1677
    %v1679 = vmul.f32 %v1678, %v1678
    %1680 = vadd.xlane.f32.xlu0 %v1679
    %v1681 = vpop.xlane.xlu0 %1680
    %v1682 = vmul.f32 %v1681, %v230
    %v1683 = vadd.f32 %v1682, 1e-05
    %v1684 = vrsqrt.pop %v1683
    %v1685 = vmul.f32 %v1684, %v1683
    %v1686 = vmul.f32 %v1685, %v1684
    %v1687 = vmul.f32 0.5, %v1686
    %v1688 = vsub.f32 1.5, %v1687
    %v1689 = vmul.f32 %v1684, %v1688
    %vm1690 = vweird.f32 %v1683
    %vm1691 = vweird.f32 %v1684
    %vm1692 = vmor %vm1690, %vm1691
    %v1693 = vsel %vm1692, %v1684, %v1689
    %v1694 = vmul.f32 %v1678, %v1693
    %v1695 = vperm.slane %v93, 2
    %v1696 = vmul.f32 %v1694, %v1695
    %v1697 = vperm.slane %v93, 3
    %v1698 = vadd.f32 %v1696, %v1697
    %v1699 = vld [vmem:[#allocation7] sm:$0xf]
    %v1700 = vld [vmem:[#allocation7 + $0x4] sm:$0xf]
    %v1701 = vld [vmem:[#allocation7 + $0x8] sm:$0xf]
    %v1702 = vld [vmem:[#allocation7 + $0xc] sm:$0xf]
    %v1703 = vld [vmem:[#allocation7 + $0x10] sm:$0xf]
    %v1704 = vld [vmem:[#allocation7 + $0x14] sm:$0xf]
    %v1705 = vld [vmem:[#allocation7 + $0x18] sm:$0xf]
    %v1706 = vld [vmem:[#allocation7 + $0x1c] sm:$0xf]
    %v1707 = vld [vmem:[#allocation7 + $0x20] sm:$0xf]
    %v1708 = vld [vmem:[#allocation7 + $0x24] sm:$0xf]
    %v1709 = vld [vmem:[#allocation7 + $0x28] sm:$0xf]
    %v1710 = vld [vmem:[#allocation7 + $0x2c] sm:$0xf]
    %v1711 = vld [vmem:[#allocation7 + $0x30] sm:$0xf]
    %v1712 = vld [vmem:[#allocation7 + $0x34] sm:$0xf]
    %v1713 = vld [vmem:[#allocation7 + $0x38] sm:$0xf]
    %v1714 = vld [vmem:[#allocation7 + $0x3c] sm:$0xf]
    %v1715 = vld [vmem:[#allocation7 + $0x40] sm:$0xf]
    %v1716 = vld [vmem:[#allocation7 + $0x44] sm:$0xf]
    %v1717 = vld [vmem:[#allocation7 + $0x48] sm:$0xf]
    %v1718 = vld [vmem:[#allocation7 + $0x4c] sm:$0xf]
    %v1719 = vld [vmem:[#allocation7 + $0x50] sm:$0xf]
    %v1720 = vld [vmem:[#allocation7 + $0x54] sm:$0xf]
    %v1721 = vld [vmem:[#allocation7 + $0x58] sm:$0xf]
    %v1722 = vld [vmem:[#allocation7 + $0x5c] sm:$0xf]
    %v1723 = vld [vmem:[#allocation7 + $0x60] sm:$0xf]
    %v1724 = vld [vmem:[#allocation7 + $0x64] sm:$0xf]
    %v1725 = vld [vmem:[#allocation7 + $0x68] sm:$0xf]
    %v1726 = vld [vmem:[#allocation7 + $0x6c] sm:$0xf]
    %v1727 = vld [vmem:[#allocation7 + $0x70] sm:$0xf]
    %v1728 = vld [vmem:[#allocation7 + $0x74] sm:$0xf]
    %v1729 = vld [vmem:[#allocation7 + $0x78] sm:$0xf]
    %v1730 = vld [vmem:[#allocation7 + $0x7c] sm:$0xf]
    %v1731 = vpack.c.bf16 %v1673, %v1673
    %v1732 = vpack.c.bf16 %v1698, %v1698
    %v1733 = vperm.slane %v93, 4
    %v1766 = vunpack.c.l.b16 %v1699
    %v1767 = vunpack.c.l.b16 %v1700
    %v1768 = vunpack.c.l.b16 %v1701
    %v1769 = vunpack.c.l.b16 %v1702
    %v1770 = vunpack.c.l.b16 %v1703
    %v1771 = vunpack.c.l.b16 %v1704
    %v1772 = vunpack.c.l.b16 %v1705
    %v1773 = vunpack.c.l.b16 %v1706
    %v1774 = vunpack.c.l.b16 %v1707
    %v1775 = vunpack.c.l.b16 %v1708
    %v1776 = vunpack.c.l.b16 %v1709
    %v1777 = vunpack.c.l.b16 %v1710
    %v1778 = vunpack.c.l.b16 %v1711
    %v1779 = vunpack.c.l.b16 %v1712
    %v1780 = vunpack.c.l.b16 %v1713
    %v1781 = vunpack.c.l.b16 %v1714
    %v1782 = vunpack.c.l.b16 %v1715
    %v1783 = vunpack.c.l.b16 %v1716
    %v1784 = vunpack.c.l.b16 %v1717
    %v1785 = vunpack.c.l.b16 %v1718
    %v1786 = vunpack.c.l.b16 %v1719
    %v1787 = vunpack.c.l.b16 %v1720
    %v1788 = vunpack.c.l.b16 %v1721
    %v1789 = vunpack.c.l.b16 %v1722
    %v1790 = vunpack.c.l.b16 %v1723
    %v1791 = vunpack.c.l.b16 %v1724
    %v1792 = vunpack.c.l.b16 %v1725
    %v1793 = vunpack.c.l.b16 %v1726
    %v1794 = vunpack.c.l.b16 %v1727
    %v1795 = vunpack.c.l.b16 %v1728
    %v1796 = vunpack.c.l.b16 %v1729
    %v1797 = vunpack.c.l.b16 %v1730
    %v1798 = vpack.c.b16 %v1767, %v1766
    %v1799 = vpack.c.b16 %v1769, %v1768
    %v1800 = vpack.c.b16 %v1771, %v1770
    %v1801 = vpack.c.b16 %v1773, %v1772
    %v1802 = vpack.c.b16 %v1775, %v1774
    %v1803 = vpack.c.b16 %v1777, %v1776
    %v1804 = vpack.c.b16 %v1779, %v1778
    %v1805 = vpack.c.b16 %v1781, %v1780
    %v1806 = vpack.c.b16 %v1783, %v1782
    %v1807 = vpack.c.b16 %v1785, %v1784
    %v1808 = vpack.c.b16 %v1787, %v1786
    %v1809 = vpack.c.b16 %v1789, %v1788
    %v1810 = vpack.c.b16 %v1791, %v1790
    %v1811 = vpack.c.b16 %v1793, %v1792
    %v1812 = vpack.c.b16 %v1795, %v1794
    %v1813 = vpack.c.b16 %v1797, %v1796
    %1830 = vmatpush.bf16.msra.mxu0 %v1805
    %1831 = vmatpush.bf16.msra.mxu0 %v1804
    %1832 = vmatpush.bf16.msra.mxu0 %v1803
    %1833 = vmatpush.bf16.msra.mxu0 %v1802
    %1834 = vmatpush.bf16.msra.mxu0 %v1801
    %1835 = vmatpush.bf16.msra.mxu0 %v1800
    %1836 = vmatpush.bf16.msra.mxu0 %v1799
    %1837 = vmatpush.bf16.msra.mxu0 %v1798
    %1838 = vmatmul.bf16.gmra.mxu0 %v1731
    %v1839 = vpop.f32.mrf.mxu0
    %v1840 = vadd.f32 %v1733, %v1839
    %v1841 = vpop.f32.mrf.mxu0
    %1842 = vdwg.mxu0
    %1843 = vmatpush.bf16.msra.mxu0 %v1813
    %1844 = vmatpush.bf16.msra.mxu0 %v1812
    %1845 = vmatpush.bf16.msra.mxu0 %v1811
    %1846 = vmatpush.bf16.msra.mxu0 %v1810
    %1847 = vmatpush.bf16.msra.mxu0 %v1809
    %1848 = vmatpush.bf16.msra.mxu0 %v1808
    %1849 = vmatpush.bf16.msra.mxu0 %v1807
    %1850 = vmatpush.bf16.msra.mxu0 %v1806
    %1851 = vmatmul.bf16.gmra.mxu0 %v1732
    %v1852 = vpop.f32.mrf.mxu0
    %v1853 = vadd.f32 %v1840, %v1852
    %v1854 = vpop.f32.mrf.mxu0
    %1855 = vdwg.mxu0
    %1856 = vmatpush.bf16.xpose.msra.mxu0 0
    %1857 = vmatpush.bf16.xpose.msra.mxu0 0
    %1858 = vmatpush.bf16.xpose.msra.mxu0 0
    %1859 = vmatpush.bf16.xpose.msra.mxu0 0
    %1860 = vmatpush.bf16.xpose.msra.mxu0 0
    %1861 = vmatpush.bf16.xpose.msra.mxu0 0
    %1862 = vmatpush.bf16.xpose.msra.mxu0 0
    %1863 = vmatpush.bf16.xpose.msra.mxu0 %v1732
    %1864 = vmatmul.bf16.gmra.mxu0 %v1731
    %v1865 = vpop.f32.mrf.mxu0
    %v1866 = vadd.f32 0.0, %v1865
    %v1867 = vpop.f32.mrf.mxu0
    %1868 = vdwg.mxu0
    %1869 = vst [vmem:[%s7] sm:$0xff] %v1673
    %1870 = vst [vmem:[%s7 + $0x8] sm:$0xff] %v1698
    %1871 = vst [vmem:[%s7 + $0x10] sm:$0xff] %v1853
    %1872 = vst [vmem:[%s7 + $0x18] sm:$0xff] 0.0
    %vm1873 = vcmask 64512
    %1874 = vst.msk [vmem:[%s7 + $0x18] sm:$0xff] %vm1873, %v1866
    // Predicated region
    $region46: #{multimodal_forward.1} parent=1 // pred_check
      _
    $region47: #{multimodal_forward.1} parent=1 // pred_check_branch
      %1876 = sbr.rel (0) target = $region49
    $region48: #{multimodal_forward.1} parent=1 // pred_region
      _
    $region49: #{multimodal_forward.1} parent=1 // pred_fallthru
      _
    // Predicated region
    $region50: #{multimodal_forward.1} parent=1 // pred_check
      _
    $region51: #{multimodal_forward.1} parent=1 // pred_check_branch
      %1878 = sbr.rel (0) target = $region53
    $region52: #{multimodal_forward.1} parent=1 // pred_region
      _
    $region53: #{multimodal_forward.1} parent=1 // pred_fallthru
      _
    %1879 = vsyncpa [#allocation3], 1
    %1880 = vsyncpa [#allocation5], 1
    %1881 = vsyncpa [#allocation8], 1

</llo_original>
